<compile_context>
chip_gen: v7x
topology: tpu7x:2x2x1
jax: 0.10.0
libtpu: 0.0.40
codegen_flags: <defaults>
</compile_context>

<pallas_src>
import functools

import jax
import jax.numpy as jnp
from jax.experimental import pallas as pl
from jax.experimental.pallas import tpu as pltpu


def _ffn_kernel(x_ref, w1_ref, b1_ref, w2_ref, b2_ref, o_ref, acc_ref):
    """One (tm, C) token tile x one th-wide hidden slab.

    x_ref:  (tm, C) bf16      w1_ref: (C, th) bf16     b1_ref: (1, th) f32
    w2_ref: (th, C) bf16      b2_ref: (1, C)  f32
    o_ref:  (tm, C) out dtype acc_ref: (tm, C) f32 scratch accumulator
    """
    k = pl.program_id(1)

    @pl.when(k == 0)
    def _init():
        acc_ref[...] = jnp.zeros_like(acc_ref)

    # Hidden slab: h = relu(x @ W1[:, slab] + b1[slab])  -- f32 accumulate.
    h = jnp.dot(x_ref[...], w1_ref[...], preferred_element_type=jnp.float32)
    h = jnp.maximum(h + b1_ref[...], 0.0)

    # Partial second matmul for this hidden slab, accumulated in f32.
    acc_ref[...] += jnp.dot(h.astype(w2_ref.dtype), w2_ref[...],
                            preferred_element_type=jnp.float32)

    @pl.when(k == pl.num_programs(1) - 1)
    def _finalize():
        # b2 is added exactly once, at the last hidden slab.
        o_ref[...] = (acc_ref[...] + b2_ref[...]).astype(o_ref.dtype)


def feed_forward(x, w1, b1, w2, b2, *, tm=256, th=256,
                 compute_dtype=jnp.bfloat16):
    """x: (B, T, C). w1: (C, H), b1: (H,), w2: (H, C), b2: (C,) -> (B, T, C)."""
    B, T, C = x.shape
    H = w1.shape[1]
    M = B * T

    # Hidden tile: lane-aligned (multiple of 128) or the full H for tiny nets.
    if H <= th:
        th = H
    assert H % th == 0 and (th % 128 == 0 or th == H), \
        "hidden tile must divide H and be lane-aligned"
    k_tiles = H // th

    # Row tile: multiple of 8 sublanes; pad the token count up to it.
    tm = max(8, (tm // 8) * 8)
    m_tiles = pl.cdiv(M, tm)
    M_pad = m_tiles * tm

    x2d = x.reshape(M, C).astype(compute_dtype)
    if M_pad != M:
        x2d = jnp.pad(x2d, ((0, M_pad - M), (0, 0)))

    w1c = w1.astype(compute_dtype)
    w2c = w2.astype(compute_dtype)
    b1_2d = b1.reshape(1, H).astype(jnp.float32)
    b2_2d = b2.reshape(1, C).astype(jnp.float32)

    bytes_el = jnp.dtype(compute_dtype).itemsize
    cost = pl.CostEstimate(
        flops=4 * M_pad * C * H,                       # two matmuls
        transcendentals=0,
        bytes_accessed=(M_pad * C * bytes_el           # x
                        + 2 * C * H * bytes_el         # W1 + W2
                        + (H + C) * 4                  # biases (f32)
                        + M_pad * C * x.dtype.itemsize))  # output

    out = pl.pallas_call(
        _ffn_kernel,
        out_shape=jax.ShapeDtypeStruct((M_pad, C), x.dtype),
        grid_spec=pltpu.PrefetchScalarGridSpec(
            num_scalar_prefetch=0,
            grid=(m_tiles, k_tiles),                   # tokens (parallel), hidden (reduction)
            in_specs=[
                pl.BlockSpec((tm, C), lambda i, k: (i, 0)),   # x row tile
                pl.BlockSpec((C, th), lambda i, k: (0, k)),   # W1 hidden slab
                pl.BlockSpec((1, th), lambda i, k: (0, k)),   # b1 hidden slab
                pl.BlockSpec((th, C), lambda i, k: (k, 0)),   # W2 hidden slab
                pl.BlockSpec((1, C), lambda i, k: (0, 0)),    # b2 (constant)
            ],
            out_specs=pl.BlockSpec((tm, C), lambda i, k: (i, 0)),
            scratch_shapes=[pltpu.VMEM((tm, C), jnp.float32)],
        ),
        compiler_params=pltpu.CompilerParams(
            dimension_semantics=("parallel", "arbitrary"),
            vmem_limit_bytes=64 * 1024 * 1024),
        cost_estimate=cost,
    )(x2d, w1c, b1_2d, w2c, b2_2d)

    if M_pad != M:
        out = out[:M]
    return out.reshape(B, T, C)


def init_params(key, n_embd):
    """Deterministic init matching nn.Linear's U(-1/sqrt(fan_in), 1/sqrt(fan_in))."""
    hidden = 4 * n_embd
    k1, k2, k3, k4 = jax.random.split(key, 4)
    bound1 = 1.0 / jnp.sqrt(n_embd)
    bound2 = 1.0 / jnp.sqrt(hidden)
    w1 = jax.random.uniform(k1, (n_embd, hidden), jnp.float32, -bound1, bound1)
    b1 = jax.random.uniform(k2, (hidden,), jnp.float32, -bound1, bound1)
    w2 = jax.random.uniform(k3, (hidden, n_embd), jnp.float32, -bound2, bound2)
    b2 = jax.random.uniform(k4, (n_embd,), jnp.float32, -bound2, bound2)
    return w1, b1, w2, b2


if __name__ == "__main__":
    # Small but tile-friendly shapes: M = B*T = 512 tokens -> 2 parallel row
    # tiles (megacore), H = 4*n_embd = 512 -> 2 hidden reduction steps, C = 128
    # keeps the output lane-dense.
    B, T, n_embd = 8, 64, 128
    dropout = 0.1                    # identity at inference (eval mode)

    key = jax.random.PRNGKey(0)
    kx, kp = jax.random.split(key)
    x = jax.random.normal(kx, (B, T, n_embd), jnp.float32)
    w1, b1, w2, b2 = init_params(kp, n_embd)

    fn = jax.jit(functools.partial(feed_forward, tm=256, th=256))
    y = fn(x, w1, b1, w2, b2)
    jax.block_until_ready(y)

    # Reference with the same bf16 operand quantization + f32 accumulation.
    bf = jnp.bfloat16
    hp = jax.lax.Precision.HIGHEST
    xq = x.reshape(-1, n_embd).astype(bf).astype(jnp.float32)
    w1q = w1.astype(bf).astype(jnp.float32)
    w2q = w2.astype(bf).astype(jnp.float32)
    h = jnp.maximum(jnp.dot(xq, w1q, precision=hp) + b1, 0.0)
    h = h.astype(bf).astype(jnp.float32)
    ref = (jnp.dot(h, w2q, precision=hp) + b2).reshape(B, T, n_embd)
    assert jnp.allclose(y, ref, atol=1e-2, rtol=1e-2), "mismatch vs reference"

    print("KERNEL_OK")
</pallas_src>

<mosaic_0001>
module attributes {stable_mosaic.version = 11 : i64} {
  func.func @_ffn_kernel(%arg0: i32, %arg1: i32, %arg2: memref<256x128xbf16, #tpu.memory_space<vmem>>, %arg3: memref<128x256xbf16, #tpu.memory_space<vmem>>, %arg4: memref<1x256xf32, #tpu.memory_space<vmem>>, %arg5: memref<256x128xbf16, #tpu.memory_space<vmem>>, %arg6: memref<1x128xf32, #tpu.memory_space<vmem>>, %arg7: memref<256x128xf32, #tpu.memory_space<vmem>>, %arg8: memref<256x128xf32, #tpu.memory_space<vmem>>) attributes {dimension_semantics = [#tpu.dimension_semantics<parallel>, #tpu.dimension_semantics<arbitrary>], iteration_bounds = array<i64: 2, 2>, scalar_prefetch = 0 : i64, scratch_operands = 1 : i64, tpu.core_type = #tpu.core_type<tc>, window_params = [{transform_indices = @transform_0, window_bounds = array<i64: 256, 128>}, {transform_indices = @transform_1, window_bounds = array<i64: 128, 256>}, {transform_indices = @transform_2, window_bounds = array<i64: 1, 256>}, {transform_indices = @transform_3, window_bounds = array<i64: 256, 128>}, {pipeline_mode = #tpu.pipeline_mode<synchronous>, transform_indices = @transform_4, window_bounds = array<i64: 1, 128>}, {transform_indices = @transform_5, window_bounds = array<i64: 256, 128>}]} {
    %c0_i32 = arith.constant 0 : i32
    %0 = arith.cmpi eq, %arg1, %c0_i32 : i32
    %1 = arith.extui %0 : i1 to i32
    %c0_i32_0 = arith.constant 0 : i32
    %2 = arith.cmpi ne, %1, %c0_i32_0 : i32
    scf.if %2 {
      %cst_15 = arith.constant 0.000000e+00 : f32
      %20 = vector.broadcast %cst_15 : f32 to vector<256x128xf32>
      %c0_16 = arith.constant 0 : index
      %c0_17 = arith.constant 0 : index
      %21 = vector.load %arg8[%c0_16, %c0_17] : memref<256x128xf32, #tpu.memory_space<vmem>>, vector<256x128xf32>
      tpu.vector_store %arg8[%c0_16, %c0_17], %20 {strides = array<i32>} : memref<256x128xf32, #tpu.memory_space<vmem>>, vector<256x128xf32>,
    } else {
    }
    %c0 = arith.constant 0 : index
    %c0_1 = arith.constant 0 : index
    %3 = vector.load %arg2[%c0, %c0_1] : memref<256x128xbf16, #tpu.memory_space<vmem>>, vector<256x128xbf16>
    %c0_2 = arith.constant 0 : index
    %c0_3 = arith.constant 0 : index
    %4 = vector.load %arg3[%c0_2, %c0_3] : memref<128x256xbf16, #tpu.memory_space<vmem>>, vector<128x256xbf16>
    %cst = arith.constant dense<0.000000e+00> : vector<256x256xf32>
    %5 = tpu.matmul %3, %4, %cst {dimension_numbers = #tpu.dot_dimension_numbers<[1], [0], [0], [1], [0, 0, 1, 1], [], []>} : vector<256x128xbf16>, vector<128x256xbf16>, vector<256x256xf32> -> vector<256x256xf32>
    %c0_4 = arith.constant 0 : index
    %c0_5 = arith.constant 0 : index
    %6 = vector.load %arg4[%c0_4, %c0_5] : memref<1x256xf32, #tpu.memory_space<vmem>>, vector<1x256xf32>
    %7 = vector.broadcast %6 : vector<1x256xf32> to vector<256x256xf32>
    %8 = arith.addf %5, %7 : vector<256x256xf32>
    %cst_6 = arith.constant 0.000000e+00 : f32
    %9 = vector.broadcast %cst_6 : f32 to vector<256x256xf32>
    %10 = arith.maximumf %8, %9 : vector<256x256xf32>
    %c0_7 = arith.constant 0 : index
    %c0_8 = arith.constant 0 : index
    %11 = vector.load %arg8[%c0_7, %c0_8] : memref<256x128xf32, #tpu.memory_space<vmem>>, vector<256x128xf32>
    %12 = arith.truncf %10 : vector<256x256xf32> to vector<256x256xbf16>
    %c0_9 = arith.constant 0 : index
    %c0_10 = arith.constant 0 : index
    %13 = vector.load %arg5[%c0_9, %c0_10] : memref<256x128xbf16, #tpu.memory_space<vmem>>, vector<256x128xbf16>
    %cst_11 = arith.constant dense<0.000000e+00> : vector<256x128xf32>
    %14 = tpu.matmul %12, %13, %cst_11 {dimension_numbers = #tpu.dot_dimension_numbers<[1], [0], [0], [1], [0, 0, 1, 1], [], []>} : vector<256x256xbf16>, vector<256x128xbf16>, vector<256x128xf32> -> vector<256x128xf32>
    %15 = arith.addf %11, %14 : vector<256x128xf32>
    %c0_12 = arith.constant 0 : index
    %c0_13 = arith.constant 0 : index
    %16 = vector.load %arg8[%c0_12, %c0_13] : memref<256x128xf32, #tpu.memory_space<vmem>>, vector<256x128xf32>
    tpu.vector_store %arg8[%c0_12, %c0_13], %15 {strides = array<i32>} : memref<256x128xf32, #tpu.memory_space<vmem>>, vector<256x128xf32>,
    %c1_i32 = arith.constant 1 : i32
    %17 = arith.cmpi eq, %arg1, %c1_i32 : i32
    %18 = arith.extui %17 : i1 to i32
    %c0_i32_14 = arith.constant 0 : i32
    %19 = arith.cmpi ne, %18, %c0_i32_14 : i32
    scf.if %19 {
      %c0_15 = arith.constant 0 : index
      %c0_16 = arith.constant 0 : index
      %20 = vector.load %arg8[%c0_15, %c0_16] : memref<256x128xf32, #tpu.memory_space<vmem>>, vector<256x128xf32>
      %c0_17 = arith.constant 0 : index
      %c0_18 = arith.constant 0 : index
      %21 = vector.load %arg6[%c0_17, %c0_18] : memref<1x128xf32, #tpu.memory_space<vmem>>, vector<1x128xf32>
      %22 = vector.broadcast %21 : vector<1x128xf32> to vector<256x128xf32>
      %23 = arith.addf %20, %22 : vector<256x128xf32>
      %c0_19 = arith.constant 0 : index
      %c0_20 = arith.constant 0 : index
      %24 = vector.load %arg7[%c0_19, %c0_20] : memref<256x128xf32, #tpu.memory_space<vmem>>, vector<256x128xf32>
      tpu.vector_store %arg7[%c0_19, %c0_20], %23 {strides = array<i32>} : memref<256x128xf32, #tpu.memory_space<vmem>>, vector<256x128xf32>,
    } else {
    }
    return
  }
  func.func @transform_0(%arg0: i32, %arg1: i32) -> (i32, i32) {
    %c0_i32 = arith.constant 0 : i32
    %c0_i32_0 = arith.constant 0 : i32
    return %arg0, %c0_i32 : i32, i32
  }
  func.func @transform_1(%arg0: i32, %arg1: i32) -> (i32, i32) {
    %c0_i32 = arith.constant 0 : i32
    %c0_i32_0 = arith.constant 0 : i32
    return %c0_i32, %arg1 : i32, i32
  }
  func.func @transform_2(%arg0: i32, %arg1: i32) -> (i32, i32) {
    %c0_i32 = arith.constant 0 : i32
    %c0_i32_0 = arith.constant 0 : i32
    return %c0_i32, %arg1 : i32, i32
  }
  func.func @transform_3(%arg0: i32, %arg1: i32) -> (i32, i32) {
    %c0_i32 = arith.constant 0 : i32
    %c0_i32_0 = arith.constant 0 : i32
    return %arg1, %c0_i32 : i32, i32
  }
  func.func @transform_4(%arg0: i32, %arg1: i32) -> (i32, i32) {
    %c0_i32 = arith.constant 0 : i32
    %c0_i32_0 = arith.constant 0 : i32
    %c0_i32_1 = arith.constant 0 : i32
    return %c0_i32, %c0_i32_0 : i32, i32
  }
  func.func @transform_5(%arg0: i32, %arg1: i32) -> (i32, i32) {
    %c0_i32 = arith.constant 0 : i32
    %c0_i32_0 = arith.constant 0 : i32
    return %arg0, %c0_i32 : i32, i32
  }
}

</mosaic_0001>

<llo_original>
// kernel: feed_forward.1
$region0: #{feed_forward.1}
  #allocation0 [shape = 'u32[]', space=smem, size = 0x4, offset = 0x4, fixed_abs, tag = 'smem constant byte address 0x4 - core index']
  #allocation1 [shape = 'u32[144,128]{1,0:T(1,128)}', space=vmem, size = 0x12000, scoped, tag = 'internal scratch']
  #allocation2 [shape = 'f32[256,128]{1,0:T(8,128)}', space=vmem, size = 0x20000, scoped, tag = 'scratch operand']
  %s0 = inlined_call_operand.hbm [shape: bf16[512,128], index: 0, kind: input, shape index: {}]
  %s1 = inlined_call_operand.hbm [shape: bf16[128,512], index: 1, kind: input, shape index: {}]
  %s2 = inlined_call_operand.hbm [shape: f32[1,512], index: 2, kind: input, shape index: {}]
  %s3 = inlined_call_operand.hbm [shape: bf16[512,128], index: 3, kind: input, shape index: {}]
  %s4 = inlined_call_operand.hbm [shape: f32[1,128], index: 4, kind: input, shape index: {}]
  %s5 = inlined_call_operand.hbm [shape: f32[512,128], index: 5, kind: output, shape index: {}]
  %s6 = sld [smem:[#allocation0]]
  $region81: #{feed_forward.1} parent=0
    _
  %s8 = ssub.s32 1, %s6
  %s9 = scalar_select 0, %s8, %s6
  $region1: #{feed_forward.1} parent=0
    #allocation3 [shape = 'u8[131072]{0}', space=vmem, size = 0x20000, scoped, tag = 'input window, operand 0']
    #allocation4 [shape = 's32[2]{0}', space=sflag, size = 0x8, scoped, tag = 'scoped memory for feed_forward.1']
    #allocation5 [shape = 's32[2]{0}', space=sflag, size = 0x8, scoped, tag = 'scoped memory for feed_forward.1']
    #allocation6 [shape = 'u8[131072]{0}', space=vmem, size = 0x20000, scoped, tag = 'input window, operand 1']
    #allocation7 [shape = 's32[2]{0}', space=sflag, size = 0x8, scoped, tag = 'scoped memory for feed_forward.1']
    #allocation8 [shape = 'u8[2048]{0}', space=vmem, size = 0x800, scoped, tag = 'input window, operand 2']
    #allocation9 [shape = 'u8[131072]{0}', space=vmem, size = 0x20000, scoped, tag = 'input window, operand 3']
    #allocation10 [shape = 's32[2]{0}', space=sflag, size = 0x8, scoped, tag = 'scoped memory for feed_forward.1']
    #allocation11 [shape = 'u8[512]{0}', space=vmem, size = 0x400, scoped, tag = 'input window, operand 4, single buffered']
    #allocation12 [shape = 'u8[262144]{0}', space=vmem, size = 0x40000, scoped, tag = 'output window, operand 0']
    %10 = vsyncpa [#allocation4], 0
    %s11 = scalar_lea.sflag [#allocation4], 1
    %12 = vsyncpa %s11, 0
    %13 = vsyncpa [#allocation7], 0
    %s14 = scalar_lea.sflag [#allocation7], 1
    %15 = vsyncpa %s14, 0
    %16 = vsyncpa [#allocation10], 0
    %s17 = scalar_lea.sflag [#allocation10], 1
    %18 = vsyncpa %s17, 0
    %19 = vsyncpa [#allocation5], 0
    %s20 = scalar_lea.sflag [#allocation5], 1
    %21 = vsyncpa %s20, 0
    loop: start=0, step=1, limit=6
    $region2: #{feed_forward.1} parent=1 // loop_pre_header
      _
    $region3: #{feed_forward.1} parent=1 // loop_header
      %s23 = sphi 0, %s27
      %p24 = scmp.ge.s32.totalorder %s23, 6
      %s30 = sphi 0, %s42
      %s31 = sphi 0, %s38
      %s32 = sphi 0, %s30
      %s33 = sphi 0, %s31
      %s34 = sphi 0, %s32
      %s35 = sphi 0, %s33
      %s45 = sphi 0, %s47
      %s48 = sphi 0, %s45
      %s49 = sphi 0, %s48
      %s65 = sphi 0, %s49
      %s71 = sphi 0, %s73
      %s74 = sphi 0, %s71
      %s75 = sphi 0, %s74
      %s91 = sphi 0, %s75
      %s97 = sphi 0, %s99
      %s100 = sphi 0, %s97
      %s101 = sphi 0, %s100
      %s117 = sphi 0, %s101
      %s123 = sphi 0, %s125
      %s126 = sphi 0, %s123
      %s127 = sphi 0, %s126
      %s143 = sphi 0, %s127
      %s147 = sphi 0, %s147
      %s149 = sphi 0, %s147
      %s150 = sphi 0, %s149
      %s164 = sphi 0, %s150
      %s170 = sphi 0, %s172
      %s173 = sphi 0, %s170
      %s174 = sphi 0, %s173
      %s190 = sphi 0, %s174
    $region4: #{feed_forward.1} parent=1 // loop_header_branch
      %26 = sbr.rel (%p24) target = $region8
    $region5: #{feed_forward.1} parent=1 // loop_body
      %s28 = ssub.s32 %s23, 1
      %s29 = ssub.s32 %s23, 2
      %s36 = sadd.s32 1, %s31
      %p37 = scmp.ge.s32.totalorder %s36, 2
      %s38 = scalar_select %p37, 0, %s36
      %s39 = sadd.s32 1, %s30
      %s40 = scalar_select %p37, %s39, %s30
      %p41 = scmp.ge.s32.totalorder %s40, 2
      %s42 = scalar_select %p41, 0, %s40
      %s43 = ssub.s32 %s30, %s42
      %p44 = scmp.eq.s32.totalorder %s43, 0
      %s46 = sadd.s32 %s45, 1
      %s47 = scalar_select %p44, %s45, %s46
      %p50 = pneg %p44
      %p51 = scmp.eq.s32.totalorder %s23, 3
      %p52 = por %p50, %p51
      %p53 = scmp.ne.s32.totalorder %s45, %s48
      %p54 = scmp.eq.s32.totalorder %s23, 0
      %p55 = por %p53, %p54
      %p56 = scmp.ne.s32.totalorder %s45, %s48
      %p57 = scmp.eq.s32.totalorder %s28, 3
      %p58 = por %p56, %p57
      %p59 = scmp.ne.s32.totalorder %s48, %s49
      %p60 = scmp.eq.s32.totalorder %s28, 0
      %p61 = por %p59, %p60
      %p62 = scmp.ne.s32.totalorder %s48, %s49
      %p63 = scmp.eq.s32.totalorder %s29, 3
      %p64 = por %p62, %p63
      %p66 = scmp.ne.s32.totalorder %s49, %s65
      %p67 = scmp.eq.s32.totalorder %s29, 0
      %p68 = por %p66, %p67
      %s69 = ssub.s32 %s31, %s38
      %p70 = scmp.eq.s32.totalorder %s69, 0
      %s72 = sadd.s32 %s71, 1
      %s73 = scalar_select %p70, %s71, %s72
      %p76 = pneg %p70
      %p77 = scmp.eq.s32.totalorder %s23, 3
      %p78 = por %p76, %p77
      %p79 = scmp.ne.s32.totalorder %s71, %s74
      %p80 = scmp.eq.s32.totalorder %s23, 0
      %p81 = por %p79, %p80
      %p82 = scmp.ne.s32.totalorder %s71, %s74
      %p83 = scmp.eq.s32.totalorder %s28, 3
      %p84 = por %p82, %p83
      %p85 = scmp.ne.s32.totalorder %s74, %s75
      %p86 = scmp.eq.s32.totalorder %s28, 0
      %p87 = por %p85, %p86
      %p88 = scmp.ne.s32.totalorder %s74, %s75
      %p89 = scmp.eq.s32.totalorder %s29, 3
      %p90 = por %p88, %p89
      %p92 = scmp.ne.s32.totalorder %s75, %s91
      %p93 = scmp.eq.s32.totalorder %s29, 0
      %p94 = por %p92, %p93
      %s95 = ssub.s32 %s31, %s38
      %p96 = scmp.eq.s32.totalorder %s95, 0
      %s98 = sadd.s32 %s97, 1
      %s99 = scalar_select %p96, %s97, %s98
      %p102 = pneg %p96
      %p103 = scmp.eq.s32.totalorder %s23, 3
      %p104 = por %p102, %p103
      %p105 = scmp.ne.s32.totalorder %s97, %s100
      %p106 = scmp.eq.s32.totalorder %s23, 0
      %p107 = por %p105, %p106
      %p108 = scmp.ne.s32.totalorder %s97, %s100
      %p109 = scmp.eq.s32.totalorder %s28, 3
      %p110 = por %p108, %p109
      %p111 = scmp.ne.s32.totalorder %s100, %s101
      %p112 = scmp.eq.s32.totalorder %s28, 0
      %p113 = por %p111, %p112
      %p114 = scmp.ne.s32.totalorder %s100, %s101
      %p115 = scmp.eq.s32.totalorder %s29, 3
      %p116 = por %p114, %p115
      %p118 = scmp.ne.s32.totalorder %s101, %s117
      %p119 = scmp.eq.s32.totalorder %s29, 0
      %p120 = por %p118, %p119
      %s121 = ssub.s32 %s31, %s38
      %p122 = scmp.eq.s32.totalorder %s121, 0
      %s124 = sadd.s32 %s123, 1
      %s125 = scalar_select %p122, %s123, %s124
      %p128 = pneg %p122
      %p129 = scmp.eq.s32.totalorder %s23, 3
      %p130 = por %p128, %p129
      %p131 = scmp.ne.s32.totalorder %s123, %s126
      %p132 = scmp.eq.s32.totalorder %s23, 0
      %p133 = por %p131, %p132
      %p134 = scmp.ne.s32.totalorder %s123, %s126
      %p135 = scmp.eq.s32.totalorder %s28, 3
      %p136 = por %p134, %p135
      %p137 = scmp.ne.s32.totalorder %s126, %s127
      %p138 = scmp.eq.s32.totalorder %s28, 0
      %p139 = por %p137, %p138
      %p140 = scmp.ne.s32.totalorder %s126, %s127
      %p141 = scmp.eq.s32.totalorder %s29, 3
      %p142 = por %p140, %p141
      %p144 = scmp.ne.s32.totalorder %s127, %s143
      %p145 = scmp.eq.s32.totalorder %s29, 0
      %p146 = por %p144, %p145
      %s148 = sadd.s32 %s147, 1
      %p151 = scmp.eq.s32.totalorder %s23, 3
      %p152 = scmp.ne.s32.totalorder %s147, %s149
      %p153 = scmp.eq.s32.totalorder %s23, 0
      %p154 = por %p152, %p153
      %p155 = scmp.ne.s32.totalorder %s147, %s149
      %p156 = scmp.eq.s32.totalorder %s28, 3
      %p157 = por %p155, %p156
      %p158 = scmp.ne.s32.totalorder %s149, %s150
      %p159 = scmp.eq.s32.totalorder %s28, 0
      %p160 = por %p158, %p159
      %p161 = scmp.ne.s32.totalorder %s149, %s150
      %p162 = scmp.eq.s32.totalorder %s29, 3
      %p163 = por %p161, %p162
      %p165 = scmp.ne.s32.totalorder %s150, %s164
      %p166 = scmp.eq.s32.totalorder %s29, 0
      %p167 = por %p165, %p166
      %s168 = ssub.s32 %s30, %s42
      %p169 = scmp.eq.s32.totalorder %s168, 0
      %s171 = sadd.s32 %s170, 1
      %s172 = scalar_select %p169, %s170, %s171
      %p175 = pneg %p169
      %p176 = scmp.eq.s32.totalorder %s23, 3
      %p177 = por %p175, %p176
      %p178 = scmp.ne.s32.totalorder %s170, %s173
      %p179 = scmp.eq.s32.totalorder %s23, 0
      %p180 = por %p178, %p179
      %p181 = scmp.ne.s32.totalorder %s170, %s173
      %p182 = scmp.eq.s32.totalorder %s28, 3
      %p183 = por %p181, %p182
      %p184 = scmp.ne.s32.totalorder %s173, %s174
      %p185 = scmp.eq.s32.totalorder %s28, 0
      %p186 = por %p184, %p185
      %p187 = scmp.ne.s32.totalorder %s173, %s174
      %p188 = scmp.eq.s32.totalorder %s29, 3
      %p189 = por %p187, %p188
      %p191 = scmp.ne.s32.totalorder %s174, %s190
      %p192 = scmp.eq.s32.totalorder %s29, 0
      %p193 = por %p191, %p192
      %p194 = scmp.le.s32.totalorder 1, %s23
      %p195 = scmp.lt.s32.totalorder %s23, 5
      %p196 = pnand %p194, %p195
      %p197 = pneg %p196
      // Predicated region
      $region9: #{feed_forward.1} parent=5 // pred_check
        _
      $region10: #{feed_forward.1} parent=5 // pred_check_branch
        %199 = sbr.rel (%p196) target = $region12
      $region11: #{feed_forward.1} parent=5 // pred_region
        %s200 = ssub.s32 %s23, 1
        // Predicated region
        $region13: #{feed_forward.1} parent=11 // pred_check
          %p201 = pneg %p160
        $region14: #{feed_forward.1} parent=11 // pred_check_branch
          %203 = sbr.rel (%p201) target = $region16
        $region15: #{feed_forward.1} parent=11 // pred_region
          %s205 = ssub.s32 16, 16
          %206 = vsyncadd [#allocation10], %s205
          %s208 = sshll.u32 [#allocation11], 4
          %s209 = int_to_ptr.vmem [resolvable:$true] %s208
          %211 = dma.hbm_to_vmem [thread:$0]  %s4, 16, %s209, [#allocation10]
        $region16: #{feed_forward.1} parent=11 // pred_fallthru
          _
      $region12: #{feed_forward.1} parent=5 // pred_fallthru
        _
      %p212 = scmp.lt.s32.totalorder %s23, 4
      // Predicated region
      $region17: #{feed_forward.1} parent=5 // pred_check
        %p213 = pneg %p212
      $region18: #{feed_forward.1} parent=5 // pred_check_branch
        %215 = sbr.rel (%p213) target = $region20
      $region19: #{feed_forward.1} parent=5 // pred_region
        // Predicated region
        $region21: #{feed_forward.1} parent=19 // pred_check
          %p216 = pneg %p55
        $region22: #{feed_forward.1} parent=19 // pred_check_branch
          %218 = sbr.rel (%p216) target = $region24
        $region23: #{feed_forward.1} parent=19 // pred_region
          %s219 = sand.u32 %s45, 1
          %s220 = scalar_lea.sflag [#allocation4], %s219
          %s221 = sand.u32 %s45, 1
          %s222 = smul.addr %s221, 128
          %s223 = scalar_lea.vmem [#allocation3], %s222
          %s224 = smul.u32 32, %s30
          %s226 = ssub.s32 2048, 2048
          %227 = vsyncadd %s220, %s226
          %s228 = smul.addr %s224, 64
          %s229 = scalar_lea.hbm %s0, %s228
          %s230 = sshll.u32 %s223, 4
          %s231 = int_to_ptr.vmem [resolvable:$true] %s230
          %236 = dma.hbm_to_vmem [thread:$0]  %s229, 2048, %s231, %s220, 64, 64, 4
        $region24: #{feed_forward.1} parent=19 // pred_fallthru
          _
        // Predicated region
        $region25: #{feed_forward.1} parent=19 // pred_check
          %p237 = pneg %p81
        $region26: #{feed_forward.1} parent=19 // pred_check_branch
          %239 = sbr.rel (%p237) target = $region28
        $region27: #{feed_forward.1} parent=19 // pred_region
          %s240 = sand.u32 %s23, 1
          %s241 = scalar_lea.sflag [#allocation7], %s240
          %s242 = sand.u32 %s71, 1
          %s243 = smul.addr %s242, 128
          %s244 = scalar_lea.vmem [#allocation6], %s243
          %s245 = smul.u32 2, %s31
          %s247 = ssub.s32 2048, 2048
          %248 = vsyncadd %s241, %s247
          %s249 = smul.addr %s245, 64
          %s250 = scalar_lea.hbm %s1, %s249
          %s251 = sshll.u32 %s244, 4
          %s252 = int_to_ptr.vmem [resolvable:$true] %s251
          %257 = dma.hbm_to_vmem [thread:$0]  %s250, 2048, %s252, %s241, 256, 128, 8
        $region28: #{feed_forward.1} parent=19 // pred_fallthru
          _
        // Predicated region
        $region29: #{feed_forward.1} parent=19 // pred_check
          %p258 = pneg %p107
        $region30: #{feed_forward.1} parent=19 // pred_check_branch
          %260 = sbr.rel (%p258) target = $region32
        $region31: #{feed_forward.1} parent=19 // pred_region
          %s261 = sand.u32 %s23, 1
          %s262 = scalar_lea.sflag [#allocation7], %s261
          %s263 = sand.u32 %s97, 1
          %s264 = smul.addr %s263, 2
          %s265 = scalar_lea.vmem [#allocation8], %s264
          %s266 = smul.u32 2, %s31
          %s268 = ssub.s32 32, 32
          %269 = vsyncadd %s262, %s268
          %s270 = smul.addr %s266, 16
          %s271 = scalar_lea.hbm %s2, %s270
          %s273 = sshll.u32 %s265, 4
          %s274 = int_to_ptr.vmem [resolvable:$true] %s273
          %276 = dma.hbm_to_vmem [thread:$0]  %s271, 32, %s274, %s262
        $region32: #{feed_forward.1} parent=19 // pred_fallthru
          _
        // Predicated region
        $region33: #{feed_forward.1} parent=19 // pred_check
          %p277 = pneg %p133
        $region34: #{feed_forward.1} parent=19 // pred_check_branch
          %279 = sbr.rel (%p277) target = $region36
        $region35: #{feed_forward.1} parent=19 // pred_region
          %s280 = sand.u32 %s23, 1
          %s281 = scalar_lea.sflag [#allocation10], %s280
          %s282 = sand.u32 %s123, 1
          %s283 = smul.addr %s282, 128
          %s284 = scalar_lea.vmem [#allocation9], %s283
          %s285 = smul.u32 32, %s31
          %s287 = ssub.s32 2048, 2048
          %288 = vsyncadd %s281, %s287
          %s289 = smul.addr %s285, 64
          %s290 = scalar_lea.hbm %s3, %s289
          %s291 = sshll.u32 %s284, 4
          %s292 = int_to_ptr.vmem [resolvable:$true] %s291
          %297 = dma.hbm_to_vmem [thread:$0]  %s290, 2048, %s292, %s281, 64, 64, 4
        $region36: #{feed_forward.1} parent=19 // pred_fallthru
          _
      $region20: #{feed_forward.1} parent=5 // pred_fallthru
        _
      %p298 = scmp.le.s32.totalorder 1, %s23
      %p299 = scmp.lt.s32.totalorder %s23, 5
      %p300 = pnand %p298, %p299
      %p301 = pneg %p300
      // Predicated region
      $region37: #{feed_forward.1} parent=5 // pred_check
        _
      $region38: #{feed_forward.1} parent=5 // pred_check_branch
        %303 = sbr.rel (%p300) target = $region40
      $region39: #{feed_forward.1} parent=5 // pred_region
        %s304 = ssub.s32 %s23, 1
        %s305 = sand.u32 %s48, 1
        %s306 = scalar_lea.sflag [#allocation4], %s305
        %s307 = sand.u32 %s48, 1
        %s308 = smul.addr %s307, 128
        %s309 = scalar_lea.vmem [#allocation3], %s308
        // Predicated region
        $region41: #{feed_forward.1} parent=39 // pred_check
          %p310 = pneg %p61
        $region42: #{feed_forward.1} parent=39 // pred_check_branch
          %312 = sbr.rel (%p310) target = $region44
        $region43: #{feed_forward.1} parent=39 // pred_region
          %313 = dma.done %s306, 2048
        $region44: #{feed_forward.1} parent=39 // pred_fallthru
          _
        %s314 = sand.u32 %s28, 1
        %s315 = scalar_lea.sflag [#allocation7], %s314
        %s316 = sand.u32 %s74, 1
        %s317 = smul.addr %s316, 128
        %s318 = scalar_lea.vmem [#allocation6], %s317
        // Predicated region
        $region45: #{feed_forward.1} parent=39 // pred_check
          %p319 = pneg %p87
        $region46: #{feed_forward.1} parent=39 // pred_check_branch
          %321 = sbr.rel (%p319) target = $region48
        $region47: #{feed_forward.1} parent=39 // pred_region
          %322 = dma.done %s315, 2048
        $region48: #{feed_forward.1} parent=39 // pred_fallthru
          _
        %s323 = sand.u32 %s28, 1
        %s324 = scalar_lea.sflag [#allocation7], %s323
        %s325 = sand.u32 %s100, 1
        %s326 = smul.addr %s325, 2
        %s327 = scalar_lea.vmem [#allocation8], %s326
        // Predicated region
        $region49: #{feed_forward.1} parent=39 // pred_check
          %p328 = pneg %p113
        $region50: #{feed_forward.1} parent=39 // pred_check_branch
          %330 = sbr.rel (%p328) target = $region52
        $region51: #{feed_forward.1} parent=39 // pred_region
          %331 = dma.done %s324, 32
        $region52: #{feed_forward.1} parent=39 // pred_fallthru
          _
        %s332 = sand.u32 %s28, 1
        %s333 = scalar_lea.sflag [#allocation10], %s332
        %s334 = sand.u32 %s126, 1
        %s335 = smul.addr %s334, 128
        %s336 = scalar_lea.vmem [#allocation9], %s335
        // Predicated region
        $region53: #{feed_forward.1} parent=39 // pred_check
          %p337 = pneg %p139
        $region54: #{feed_forward.1} parent=39 // pred_check_branch
          %339 = sbr.rel (%p337) target = $region56
        $region55: #{feed_forward.1} parent=39 // pred_region
          %340 = dma.done %s333, 2048
        $region56: #{feed_forward.1} parent=39 // pred_fallthru
          _
        // Predicated region
        $region57: #{feed_forward.1} parent=39 // pred_check
          %p341 = pneg %p160
        $region58: #{feed_forward.1} parent=39 // pred_check_branch
          %343 = sbr.rel (%p341) target = $region60
        $region59: #{feed_forward.1} parent=39 // pred_region
          %344 = dma.done [#allocation10], 16
        $region60: #{feed_forward.1} parent=39 // pred_fallthru
          _
        %s345 = sand.u32 %s48, 1
        %s346 = scalar_lea.sflag [#allocation4], %s345
        %s347 = sand.u32 %s48, 1
        %s348 = smul.addr %s347, 128
        %s349 = scalar_lea.vmem [#allocation3], %s348
        %p350 = pneg %p61
        %p351 = pneg %p58
        %s352 = sand.u32 %s28, 1
        %s353 = scalar_lea.sflag [#allocation7], %s352
        %s354 = sand.u32 %s74, 1
        %s355 = smul.addr %s354, 128
        %s356 = scalar_lea.vmem [#allocation6], %s355
        %p357 = pneg %p87
        %p358 = pneg %p84
        %s359 = sand.u32 %s28, 1
        %s360 = scalar_lea.sflag [#allocation7], %s359
        %s361 = sand.u32 %s100, 1
        %s362 = smul.addr %s361, 2
        %s363 = scalar_lea.vmem [#allocation8], %s362
        %p364 = pneg %p113
        %p365 = pneg %p110
        %s366 = sand.u32 %s28, 1
        %s367 = scalar_lea.sflag [#allocation10], %s366
        %s368 = sand.u32 %s126, 1
        %s369 = smul.addr %s368, 128
        %s370 = scalar_lea.vmem [#allocation9], %s369
        %p371 = pneg %p139
        %p372 = pneg %p136
        %p373 = pneg %p160
        %p374 = pneg %p157
        %p375 = pneg %p186
        %p376 = pneg %p183
        %s377 = sand.u32 %s173, 1
        %s378 = scalar_lea.sflag [#allocation5], %s377
        %s379 = sand.u32 %s173, 1
        %s380 = smul.addr %s379, 256
        %s381 = scalar_lea.vmem [#allocation12], %s380
        %s382 = smul.u32 32, %s32
        %s383 = smul.u32 2, %s33
        %s384 = smul.u32 2, %s33
        %s385 = smul.u32 32, %s33
        %s386 = smul.u32 32, %s32
        %p388 = scmp.eq.s32.totalorder %s33, 0
        // Predicated region
        $region61: #{feed_forward.1} parent=39 // pred_check
          %p389 = pneg %p388
        $region62: #{feed_forward.1} parent=39 // pred_check_branch
          %391 = sbr.rel (%p389) target = $region64
        $region63: #{feed_forward.1} parent=39 // pred_region
          %392 = vst [vmem:[#allocation2] sm:$0xff] 0.0
          %393 = vst [vmem:[#allocation2 + $0x8] sm:$0xff] 0.0
          %394 = vst [vmem:[#allocation2 + $0x10] sm:$0xff] 0.0
          %395 = vst [vmem:[#allocation2 + $0x18] sm:$0xff] 0.0
          %396 = vst [vmem:[#allocation2 + $0x20] sm:$0xff] 0.0
          %397 = vst [vmem:[#allocation2 + $0x28] sm:$0xff] 0.0
          %398 = vst [vmem:[#allocation2 + $0x30] sm:$0xff] 0.0
          %399 = vst [vmem:[#allocation2 + $0x38] sm:$0xff] 0.0
          %400 = vst [vmem:[#allocation2 + $0x40] sm:$0xff] 0.0
          %401 = vst [vmem:[#allocation2 + $0x48] sm:$0xff] 0.0
          %402 = vst [vmem:[#allocation2 + $0x50] sm:$0xff] 0.0
          %403 = vst [vmem:[#allocation2 + $0x58] sm:$0xff] 0.0
          %404 = vst [vmem:[#allocation2 + $0x60] sm:$0xff] 0.0
          %405 = vst [vmem:[#allocation2 + $0x68] sm:$0xff] 0.0
          %406 = vst [vmem:[#allocation2 + $0x70] sm:$0xff] 0.0
          %407 = vst [vmem:[#allocation2 + $0x78] sm:$0xff] 0.0
          %408 = vst [vmem:[#allocation2 + $0x80] sm:$0xff] 0.0
          %409 = vst [vmem:[#allocation2 + $0x88] sm:$0xff] 0.0
          %410 = vst [vmem:[#allocation2 + $0x90] sm:$0xff] 0.0
          %411 = vst [vmem:[#allocation2 + $0x98] sm:$0xff] 0.0
          %412 = vst [vmem:[#allocation2 + $0xa0] sm:$0xff] 0.0
          %413 = vst [vmem:[#allocation2 + $0xa8] sm:$0xff] 0.0
          %414 = vst [vmem:[#allocation2 + $0xb0] sm:$0xff] 0.0
          %415 = vst [vmem:[#allocation2 + $0xb8] sm:$0xff] 0.0
          %416 = vst [vmem:[#allocation2 + $0xc0] sm:$0xff] 0.0
          %417 = vst [vmem:[#allocation2 + $0xc8] sm:$0xff] 0.0
          %418 = vst [vmem:[#allocation2 + $0xd0] sm:$0xff] 0.0
          %419 = vst [vmem:[#allocation2 + $0xd8] sm:$0xff] 0.0
          %420 = vst [vmem:[#allocation2 + $0xe0] sm:$0xff] 0.0
          %421 = vst [vmem:[#allocation2 + $0xe8] sm:$0xff] 0.0
          %422 = vst [vmem:[#allocation2 + $0xf0] sm:$0xff] 0.0
          %423 = vst [vmem:[#allocation2 + $0xf8] sm:$0xff] 0.0
        $region64: #{feed_forward.1} parent=39 // pred_fallthru
          _
        %v424 = vld [vmem:[%s309] sm:$0xf]
        %v425 = vld [vmem:[%s309 + $0x4] sm:$0xf]
        %v426 = vld [vmem:[%s309 + $0x8] sm:$0xf]
        %v427 = vld [vmem:[%s309 + $0xc] sm:$0xf]
        %v428 = vld [vmem:[%s309 + $0x10] sm:$0xf]
        %v429 = vld [vmem:[%s309 + $0x14] sm:$0xf]
        %v430 = vld [vmem:[%s309 + $0x18] sm:$0xf]
        %v431 = vld [vmem:[%s309 + $0x1c] sm:$0xf]
        %v432 = vld [vmem:[%s309 + $0x20] sm:$0xf]
        %v433 = vld [vmem:[%s309 + $0x24] sm:$0xf]
        %v434 = vld [vmem:[%s309 + $0x28] sm:$0xf]
        %v435 = vld [vmem:[%s309 + $0x2c] sm:$0xf]
        %v436 = vld [vmem:[%s309 + $0x30] sm:$0xf]
        %v437 = vld [vmem:[%s309 + $0x34] sm:$0xf]
        %v438 = vld [vmem:[%s309 + $0x38] sm:$0xf]
        %v439 = vld [vmem:[%s309 + $0x3c] sm:$0xf]
        %v440 = vld [vmem:[%s309 + $0x40] sm:$0xf]
        %v441 = vld [vmem:[%s309 + $0x44] sm:$0xf]
        %v442 = vld [vmem:[%s309 + $0x48] sm:$0xf]
        %v443 = vld [vmem:[%s309 + $0x4c] sm:$0xf]
        %v444 = vld [vmem:[%s309 + $0x50] sm:$0xf]
        %v445 = vld [vmem:[%s309 + $0x54] sm:$0xf]
        %v446 = vld [vmem:[%s309 + $0x58] sm:$0xf]
        %v447 = vld [vmem:[%s309 + $0x5c] sm:$0xf]
        %v448 = vld [vmem:[%s309 + $0x60] sm:$0xf]
        %v449 = vld [vmem:[%s309 + $0x64] sm:$0xf]
        %v450 = vld [vmem:[%s309 + $0x68] sm:$0xf]
        %v451 = vld [vmem:[%s309 + $0x6c] sm:$0xf]
        %v452 = vld [vmem:[%s309 + $0x70] sm:$0xf]
        %v453 = vld [vmem:[%s309 + $0x74] sm:$0xf]
        %v454 = vld [vmem:[%s309 + $0x78] sm:$0xf]
        %v455 = vld [vmem:[%s309 + $0x7c] sm:$0xf]
        %v456 = vld [vmem:[%s318] sm:$0xff]
        %v457 = vld [vmem:[%s318 + $0x8] sm:$0xff]
        %v458 = vld [vmem:[%s318 + $0x10] sm:$0xff]
        %v459 = vld [vmem:[%s318 + $0x18] sm:$0xff]
        %v460 = vld [vmem:[%s318 + $0x20] sm:$0xff]
        %v461 = vld [vmem:[%s318 + $0x28] sm:$0xff]
        %v462 = vld [vmem:[%s318 + $0x30] sm:$0xff]
        %v463 = vld [vmem:[%s318 + $0x38] sm:$0xff]
        %v464 = vld [vmem:[%s318 + $0x40] sm:$0xff]
        %v465 = vld [vmem:[%s318 + $0x48] sm:$0xff]
        %v466 = vld [vmem:[%s318 + $0x50] sm:$0xff]
        %v467 = vld [vmem:[%s318 + $0x58] sm:$0xff]
        %v468 = vld [vmem:[%s318 + $0x60] sm:$0xff]
        %v469 = vld [vmem:[%s318 + $0x68] sm:$0xff]
        %v470 = vld [vmem:[%s318 + $0x70] sm:$0xff]
        %v471 = vld [vmem:[%s318 + $0x78] sm:$0xff]
        %v472 = vld [vmem:[%s327] sm:$0x3]
        %v474 = vlaneseq
        %v475 = vshrl.u32 %v474, 7
        %v476 = vsub.s32 0, %v475
        %v477 = vrot.slane %v472, %v476
        %v478 = vlaneseq
        %v479 = vshrl.u32 %v478, 7
        %v480 = vsub.s32 1, %v479
        %v481 = vrot.slane %v472, %v480
        %v516 = vunpack.c.l.b16 %v424
        %v517 = vunpack.c.l.b16 %v425
        %v518 = vunpack.c.l.b16 %v426
        %v519 = vunpack.c.l.b16 %v427
        %v520 = vunpack.c.l.b16 %v428
        %v521 = vunpack.c.l.b16 %v429
        %v522 = vunpack.c.l.b16 %v430
        %v523 = vunpack.c.l.b16 %v431
        %v524 = vunpack.c.l.b16 %v432
        %v525 = vunpack.c.l.b16 %v433
        %v526 = vunpack.c.l.b16 %v434
        %v527 = vunpack.c.l.b16 %v435
        %v528 = vunpack.c.l.b16 %v436
        %v529 = vunpack.c.l.b16 %v437
        %v530 = vunpack.c.l.b16 %v438
        %v531 = vunpack.c.l.b16 %v439
        %v532 = vunpack.c.l.b16 %v440
        %v533 = vunpack.c.l.b16 %v441
        %v534 = vunpack.c.l.b16 %v442
        %v535 = vunpack.c.l.b16 %v443
        %v536 = vunpack.c.l.b16 %v444
        %v537 = vunpack.c.l.b16 %v445
        %v538 = vunpack.c.l.b16 %v446
        %v539 = vunpack.c.l.b16 %v447
        %v540 = vunpack.c.l.b16 %v448
        %v541 = vunpack.c.l.b16 %v449
        %v542 = vunpack.c.l.b16 %v450
        %v543 = vunpack.c.l.b16 %v451
        %v544 = vunpack.c.l.b16 %v452
        %v545 = vunpack.c.l.b16 %v453
        %v546 = vunpack.c.l.b16 %v454
        %v547 = vunpack.c.l.b16 %v455
        %v548 = vpack.c.b16 %v517, %v516
        %v549 = vpack.c.b16 %v519, %v518
        %v550 = vpack.c.b16 %v521, %v520
        %v551 = vpack.c.b16 %v523, %v522
        %v552 = vpack.c.b16 %v525, %v524
        %v553 = vpack.c.b16 %v527, %v526
        %v554 = vpack.c.b16 %v529, %v528
        %v555 = vpack.c.b16 %v531, %v530
        %v556 = vpack.c.b16 %v533, %v532
        %v557 = vpack.c.b16 %v535, %v534
        %v558 = vpack.c.b16 %v537, %v536
        %v559 = vpack.c.b16 %v539, %v538
        %v560 = vpack.c.b16 %v541, %v540
        %v561 = vpack.c.b16 %v543, %v542
        %v562 = vpack.c.b16 %v545, %v544
        %v563 = vpack.c.b16 %v547, %v546
        %v596 = vunpack.c.l.b16 %v456
        %v597 = vunpack.c.h.b16 %v456
        %v598 = vunpack.c.l.b16 %v457
        %v599 = vunpack.c.h.b16 %v457
        %v600 = vunpack.c.l.b16 %v458
        %v601 = vunpack.c.h.b16 %v458
        %v602 = vunpack.c.l.b16 %v459
        %v603 = vunpack.c.h.b16 %v459
        %v604 = vunpack.c.l.b16 %v460
        %v605 = vunpack.c.h.b16 %v460
        %v606 = vunpack.c.l.b16 %v461
        %v607 = vunpack.c.h.b16 %v461
        %v608 = vunpack.c.l.b16 %v462
        %v609 = vunpack.c.h.b16 %v462
        %v610 = vunpack.c.l.b16 %v463
        %v611 = vunpack.c.h.b16 %v463
        %v612 = vunpack.c.l.b16 %v464
        %v613 = vunpack.c.h.b16 %v464
        %v614 = vunpack.c.l.b16 %v465
        %v615 = vunpack.c.h.b16 %v465
        %v616 = vunpack.c.l.b16 %v466
        %v617 = vunpack.c.h.b16 %v466
        %v618 = vunpack.c.l.b16 %v467
        %v619 = vunpack.c.h.b16 %v467
        %v620 = vunpack.c.l.b16 %v468
        %v621 = vunpack.c.h.b16 %v468
        %v622 = vunpack.c.l.b16 %v469
        %v623 = vunpack.c.h.b16 %v469
        %v624 = vunpack.c.l.b16 %v470
        %v625 = vunpack.c.h.b16 %v470
        %v626 = vunpack.c.l.b16 %v471
        %v627 = vunpack.c.h.b16 %v471
        %v628 = vpack.c.b16 %v598, %v596
        %v629 = vpack.c.b16 %v599, %v597
        %v630 = vpack.c.b16 %v602, %v600
        %v631 = vpack.c.b16 %v603, %v601
        %v632 = vpack.c.b16 %v606, %v604
        %v633 = vpack.c.b16 %v607, %v605
        %v634 = vpack.c.b16 %v610, %v608
        %v635 = vpack.c.b16 %v611, %v609
        %v636 = vpack.c.b16 %v614, %v612
        %v637 = vpack.c.b16 %v615, %v613
        %v638 = vpack.c.b16 %v618, %v616
        %v639 = vpack.c.b16 %v619, %v617
        %v640 = vpack.c.b16 %v622, %v620
        %v641 = vpack.c.b16 %v623, %v621
        %v642 = vpack.c.b16 %v626, %v624
        %v643 = vpack.c.b16 %v627, %v625
        %660 = vmatprep.subr.bf16.mxu0 %v629
        %661 = vmatpush1.bf16.msra.mxu0 %v628
        %662 = vmatprep.subr.bf16.mxu0 %v631
        %663 = vmatpush1.bf16.msra.mxu0 %v630
        %664 = vmatprep.subr.bf16.mxu0 %v633
        %665 = vmatpush1.bf16.msra.mxu0 %v632
        %666 = vmatprep.subr.bf16.mxu0 %v635
        %667 = vmatpush1.bf16.msra.mxu0 %v634
        %668 = vmatprep.subr.bf16.mxu0 %v637
        %669 = vmatpush1.bf16.msra.mxu0 %v636
        %670 = vmatprep.subr.bf16.mxu0 %v639
        %671 = vmatpush1.bf16.msra.mxu0 %v638
        %672 = vmatprep.subr.bf16.mxu0 %v641
        %673 = vmatpush1.bf16.msra.mxu0 %v640
        %674 = vmatprep.subr.bf16.mxu0 %v643
        %675 = vmatpush1.bf16.msra.mxu0 %v642
        %676 = vmatprep.subr.bf16.mxu0 0
        %677 = vmatpush1.bf16.msra.mxu0 0
        %678 = vmatprep.subr.bf16.mxu0 0
        %679 = vmatpush1.bf16.msra.mxu0 0
        %680 = vmatprep.subr.bf16.mxu0 0
        %681 = vmatpush1.bf16.msra.mxu0 0
        %682 = vmatprep.subr.bf16.mxu0 0
        %683 = vmatpush1.bf16.msra.mxu0 0
        %684 = vmatprep.subr.bf16.mxu0 0
        %685 = vmatpush1.bf16.msra.mxu0 0
        %686 = vmatprep.subr.bf16.mxu0 0
        %687 = vmatpush1.bf16.msra.mxu0 0
        %688 = vmatprep.subr.bf16.mxu0 0
        %689 = vmatpush1.bf16.msra.mxu0 0
        %690 = vmatprep.subr.bf16.mxu0 0
        %691 = vmatpush1.bf16.msra.mxu0 0
        %692 = vmatprep.mubr.bf16.mxu0 0
        %693 = vmatmul.mubr.bf16.gmra.mrb[0].mxu0 %v548
        %v694 = vpop.f32.mrb[0].mxu0
        %v695 = vadd.f32 %v477, %v694
        %v696 = vpop.f32.mrb[0].mxu0
        %v697 = vadd.f32 %v481, %v696
        %v698 = vpop.f32.mrb[0].mxu0
        %v699 = vadd.f32 %v477, %v698
        %v700 = vpop.f32.mrb[0].mxu0
        %v701 = vadd.f32 %v481, %v700
        %702 = vmatprep.mubr.bf16.mxu0 0
        %703 = vmatmul.mubr.bf16.gmra.mrb[0].mxu0 %v549
        %v704 = vpop.f32.mrb[0].mxu0
        %v705 = vadd.f32 %v477, %v704
        %v706 = vpop.f32.mrb[0].mxu0
        %v707 = vadd.f32 %v481, %v706
        %v708 = vpop.f32.mrb[0].mxu0
        %v709 = vadd.f32 %v477, %v708
        %v710 = vpop.f32.mrb[0].mxu0
        %v711 = vadd.f32 %v481, %v710
        %712 = vmatprep.mubr.bf16.mxu0 0
        %713 = vmatmul.mubr.bf16.gmra.mrb[0].mxu0 %v550
        %v714 = vpop.f32.mrb[0].mxu0
        %v715 = vadd.f32 %v477, %v714
        %v716 = vpop.f32.mrb[0].mxu0
        %v717 = vadd.f32 %v481, %v716
        %v718 = vpop.f32.mrb[0].mxu0
        %v719 = vadd.f32 %v477, %v718
        %v720 = vpop.f32.mrb[0].mxu0
        %v721 = vadd.f32 %v481, %v720
        %722 = vmatprep.mubr.bf16.mxu0 0
        %723 = vmatmul.mubr.bf16.gmra.mrb[0].mxu0 %v551
        %v724 = vpop.f32.mrb[0].mxu0
        %v725 = vadd.f32 %v477, %v724
        %v726 = vpop.f32.mrb[0].mxu0
        %v727 = vadd.f32 %v481, %v726
        %v728 = vpop.f32.mrb[0].mxu0
        %v729 = vadd.f32 %v477, %v728
        %v730 = vpop.f32.mrb[0].mxu0
        %v731 = vadd.f32 %v481, %v730
        %732 = vmatprep.mubr.bf16.mxu0 0
        %733 = vmatmul.mubr.bf16.gmra.mrb[0].mxu0 %v552
        %v734 = vpop.f32.mrb[0].mxu0
        %v735 = vadd.f32 %v477, %v734
        %v736 = vpop.f32.mrb[0].mxu0
        %v737 = vadd.f32 %v481, %v736
        %v738 = vpop.f32.mrb[0].mxu0
        %v739 = vadd.f32 %v477, %v738
        %v740 = vpop.f32.mrb[0].mxu0
        %v741 = vadd.f32 %v481, %v740
        %742 = vmatprep.mubr.bf16.mxu0 0
        %743 = vmatmul.mubr.bf16.gmra.mrb[0].mxu0 %v553
        %v744 = vpop.f32.mrb[0].mxu0
        %v745 = vadd.f32 %v477, %v744
        %v746 = vpop.f32.mrb[0].mxu0
        %v747 = vadd.f32 %v481, %v746
        %v748 = vpop.f32.mrb[0].mxu0
        %v749 = vadd.f32 %v477, %v748
        %v750 = vpop.f32.mrb[0].mxu0
        %v751 = vadd.f32 %v481, %v750
        %752 = vmatprep.mubr.bf16.mxu0 0
        %753 = vmatmul.mubr.bf16.gmra.mrb[0].mxu0 %v554
        %v754 = vpop.f32.mrb[0].mxu0
        %v755 = vadd.f32 %v477, %v754
        %v756 = vpop.f32.mrb[0].mxu0
        %v757 = vadd.f32 %v481, %v756
        %v758 = vpop.f32.mrb[0].mxu0
        %v759 = vadd.f32 %v477, %v758
        %v760 = vpop.f32.mrb[0].mxu0
        %v761 = vadd.f32 %v481, %v760
        %762 = vmatprep.mubr.bf16.mxu0 0
        %763 = vmatmul.mubr.bf16.gmra.mrb[0].mxu0 %v555
        %v764 = vpop.f32.mrb[0].mxu0
        %v765 = vadd.f32 %v477, %v764
        %v766 = vpop.f32.mrb[0].mxu0
        %v767 = vadd.f32 %v481, %v766
        %v768 = vpop.f32.mrb[0].mxu0
        %v769 = vadd.f32 %v477, %v768
        %v770 = vpop.f32.mrb[0].mxu0
        %v771 = vadd.f32 %v481, %v770
        %772 = vmatprep.mubr.bf16.mxu0 0
        %773 = vmatmul.mubr.bf16.gmra.mrb[0].mxu0 %v556
        %v774 = vpop.f32.mrb[0].mxu0
        %v775 = vadd.f32 %v477, %v774
        %v776 = vpop.f32.mrb[0].mxu0
        %v777 = vadd.f32 %v481, %v776
        %v778 = vpop.f32.mrb[0].mxu0
        %v779 = vadd.f32 %v477, %v778
        %v780 = vpop.f32.mrb[0].mxu0
        %v781 = vadd.f32 %v481, %v780
        %782 = vmatprep.mubr.bf16.mxu0 0
        %783 = vmatmul.mubr.bf16.gmra.mrb[0].mxu0 %v557
        %v784 = vpop.f32.mrb[0].mxu0
        %v785 = vadd.f32 %v477, %v784
        %v786 = vpop.f32.mrb[0].mxu0
        %v787 = vadd.f32 %v481, %v786
        %v788 = vpop.f32.mrb[0].mxu0
        %v789 = vadd.f32 %v477, %v788
        %v790 = vpop.f32.mrb[0].mxu0
        %v791 = vadd.f32 %v481, %v790
        %792 = vmatprep.mubr.bf16.mxu0 0
        %793 = vmatmul.mubr.bf16.gmra.mrb[0].mxu0 %v558
        %v794 = vpop.f32.mrb[0].mxu0
        %v795 = vadd.f32 %v477, %v794
        %v796 = vpop.f32.mrb[0].mxu0
        %v797 = vadd.f32 %v481, %v796
        %v798 = vpop.f32.mrb[0].mxu0
        %v799 = vadd.f32 %v477, %v798
        %v800 = vpop.f32.mrb[0].mxu0
        %v801 = vadd.f32 %v481, %v800
        %802 = vmatprep.mubr.bf16.mxu0 0
        %803 = vmatmul.mubr.bf16.gmra.mrb[0].mxu0 %v559
        %v804 = vpop.f32.mrb[0].mxu0
        %v805 = vadd.f32 %v477, %v804
        %v806 = vpop.f32.mrb[0].mxu0
        %v807 = vadd.f32 %v481, %v806
        %v808 = vpop.f32.mrb[0].mxu0
        %v809 = vadd.f32 %v477, %v808
        %v810 = vpop.f32.mrb[0].mxu0
        %v811 = vadd.f32 %v481, %v810
        %812 = vmatprep.mubr.bf16.mxu0 0
        %813 = vmatmul.mubr.bf16.gmra.mrb[0].mxu0 %v560
        %v814 = vpop.f32.mrb[0].mxu0
        %v815 = vadd.f32 %v477, %v814
        %v816 = vpop.f32.mrb[0].mxu0
        %v817 = vadd.f32 %v481, %v816
        %v818 = vpop.f32.mrb[0].mxu0
        %v819 = vadd.f32 %v477, %v818
        %v820 = vpop.f32.mrb[0].mxu0
        %v821 = vadd.f32 %v481, %v820
        %822 = vmatprep.mubr.bf16.mxu0 0
        %823 = vmatmul.mubr.bf16.gmra.mrb[0].mxu0 %v561
        %v824 = vpop.f32.mrb[0].mxu0
        %v825 = vadd.f32 %v477, %v824
        %v826 = vpop.f32.mrb[0].mxu0
        %v827 = vadd.f32 %v481, %v826
        %v828 = vpop.f32.mrb[0].mxu0
        %v829 = vadd.f32 %v477, %v828
        %v830 = vpop.f32.mrb[0].mxu0
        %v831 = vadd.f32 %v481, %v830
        %832 = vmatprep.mubr.bf16.mxu0 0
        %833 = vmatmul.mubr.bf16.gmra.mrb[0].mxu0 %v562
        %v834 = vpop.f32.mrb[0].mxu0
        %v835 = vadd.f32 %v477, %v834
        %v836 = vpop.f32.mrb[0].mxu0
        %v837 = vadd.f32 %v481, %v836
        %v838 = vpop.f32.mrb[0].mxu0
        %v839 = vadd.f32 %v477, %v838
        %v840 = vpop.f32.mrb[0].mxu0
        %v841 = vadd.f32 %v481, %v840
        %842 = vmatprep.mubr.bf16.mxu0 0
        %843 = vmatmul.mubr.bf16.gmra.mrb[0].mxu0 %v563
        %v844 = vpop.f32.mrb[0].mxu0
        %v845 = vadd.f32 %v477, %v844
        %v846 = vpop.f32.mrb[0].mxu0
        %v847 = vadd.f32 %v481, %v846
        %v848 = vpop.f32.mrb[0].mxu0
        %v849 = vadd.f32 %v477, %v848
        %v850 = vpop.f32.mrb[0].mxu0
        %v851 = vadd.f32 %v481, %v850
        %852 = vdwg.mxu0
        %v853 = vmax.f32 %v695, 0.0
        %v854 = vmax.f32 %v697, 0.0
        %v855 = vmax.f32 %v699, 0.0
        %v856 = vmax.f32 %v701, 0.0
        %v857 = vmax.f32 %v705, 0.0
        %v858 = vmax.f32 %v707, 0.0
        %v859 = vmax.f32 %v709, 0.0
        %v860 = vmax.f32 %v711, 0.0
        %v861 = vmax.f32 %v715, 0.0
        %v862 = vmax.f32 %v717, 0.0
        %v863 = vmax.f32 %v719, 0.0
        %v864 = vmax.f32 %v721, 0.0
        %v865 = vmax.f32 %v725, 0.0
        %v866 = vmax.f32 %v727, 0.0
        %v867 = vmax.f32 %v729, 0.0
        %v868 = vmax.f32 %v731, 0.0
        %v869 = vmax.f32 %v735, 0.0
        %v870 = vmax.f32 %v737, 0.0
        %v871 = vmax.f32 %v739, 0.0
        %v872 = vmax.f32 %v741, 0.0
        %v873 = vmax.f32 %v745, 0.0
        %v874 = vmax.f32 %v747, 0.0
        %v875 = vmax.f32 %v749, 0.0
        %v876 = vmax.f32 %v751, 0.0
        %v877 = vmax.f32 %v755, 0.0
        %v878 = vmax.f32 %v757, 0.0
        %v879 = vmax.f32 %v759, 0.0
        %v880 = vmax.f32 %v761, 0.0
        %v881 = vmax.f32 %v765, 0.0
        %v882 = vmax.f32 %v767, 0.0
        %v883 = vmax.f32 %v769, 0.0
        %v884 = vmax.f32 %v771, 0.0
        %v885 = vmax.f32 %v775, 0.0
        %v886 = vmax.f32 %v777, 0.0
        %v887 = vmax.f32 %v779, 0.0
        %v888 = vmax.f32 %v781, 0.0
        %v889 = vmax.f32 %v785, 0.0
        %v890 = vmax.f32 %v787, 0.0
        %v891 = vmax.f32 %v789, 0.0
        %v892 = vmax.f32 %v791, 0.0
        %v893 = vmax.f32 %v795, 0.0
        %v894 = vmax.f32 %v797, 0.0
        %v895 = vmax.f32 %v799, 0.0
        %v896 = vmax.f32 %v801, 0.0
        %v897 = vmax.f32 %v805, 0.0
        %v898 = vmax.f32 %v807, 0.0
        %v899 = vmax.f32 %v809, 0.0
        %v900 = vmax.f32 %v811, 0.0
        %v901 = vmax.f32 %v815, 0.0
        %v902 = vmax.f32 %v817, 0.0
        %v903 = vmax.f32 %v819, 0.0
        %v904 = vmax.f32 %v821, 0.0
        %v905 = vmax.f32 %v825, 0.0
        %v906 = vmax.f32 %v827, 0.0
        %v907 = vmax.f32 %v829, 0.0
        %v908 = vmax.f32 %v831, 0.0
        %v909 = vmax.f32 %v835, 0.0
        %v910 = vmax.f32 %v837, 0.0
        %v911 = vmax.f32 %v839, 0.0
        %v912 = vmax.f32 %v841, 0.0
        %v913 = vmax.f32 %v845, 0.0
        %v914 = vmax.f32 %v847, 0.0
        %v915 = vmax.f32 %v849, 0.0
        %v916 = vmax.f32 %v851, 0.0
        %v917 = vld [vmem:[#allocation2] sm:$0xff]
        %v918 = vld [vmem:[#allocation2 + $0x8] sm:$0xff]
        %v919 = vld [vmem:[#allocation2 + $0x10] sm:$0xff]
        %v920 = vld [vmem:[#allocation2 + $0x18] sm:$0xff]
        %v921 = vld [vmem:[#allocation2 + $0x20] sm:$0xff]
        %v922 = vld [vmem:[#allocation2 + $0x28] sm:$0xff]
        %v923 = vld [vmem:[#allocation2 + $0x30] sm:$0xff]
        %v924 = vld [vmem:[#allocation2 + $0x38] sm:$0xff]
        %v925 = vld [vmem:[#allocation2 + $0x40] sm:$0xff]
        %v926 = vld [vmem:[#allocation2 + $0x48] sm:$0xff]
        %v927 = vld [vmem:[#allocation2 + $0x50] sm:$0xff]
        %v928 = vld [vmem:[#allocation2 + $0x58] sm:$0xff]
        %v929 = vld [vmem:[#allocation2 + $0x60] sm:$0xff]
        %v930 = vld [vmem:[#allocation2 + $0x68] sm:$0xff]
        %v931 = vld [vmem:[#allocation2 + $0x70] sm:$0xff]
        %v932 = vld [vmem:[#allocation2 + $0x78] sm:$0xff]
        %v933 = vld [vmem:[#allocation2 + $0x80] sm:$0xff]
        %v934 = vld [vmem:[#allocation2 + $0x88] sm:$0xff]
        %v935 = vld [vmem:[#allocation2 + $0x90] sm:$0xff]
        %v936 = vld [vmem:[#allocation2 + $0x98] sm:$0xff]
        %v937 = vld [vmem:[#allocation2 + $0xa0] sm:$0xff]
        %v938 = vld [vmem:[#allocation2 + $0xa8] sm:$0xff]
        %v939 = vld [vmem:[#allocation2 + $0xb0] sm:$0xff]
        %v940 = vld [vmem:[#allocation2 + $0xb8] sm:$0xff]
        %v941 = vld [vmem:[#allocation2 + $0xc0] sm:$0xff]
        %v942 = vld [vmem:[#allocation2 + $0xc8] sm:$0xff]
        %v943 = vld [vmem:[#allocation2 + $0xd0] sm:$0xff]
        %v944 = vld [vmem:[#allocation2 + $0xd8] sm:$0xff]
        %v945 = vld [vmem:[#allocation2 + $0xe0] sm:$0xff]
        %v946 = vld [vmem:[#allocation2 + $0xe8] sm:$0xff]
        %v947 = vld [vmem:[#allocation2 + $0xf0] sm:$0xff]
        %v948 = vld [vmem:[#allocation2 + $0xf8] sm:$0xff]
        %v949 = vpack.c.bf16 %v855, %v853
        %v950 = vpack.c.bf16 %v856, %v854
        %v951 = vpack.c.bf16 %v859, %v857
        %v952 = vpack.c.bf16 %v860, %v858
        %v953 = vpack.c.bf16 %v863, %v861
        %v954 = vpack.c.bf16 %v864, %v862
        %v955 = vpack.c.bf16 %v867, %v865
        %v956 = vpack.c.bf16 %v868, %v866
        %v957 = vpack.c.bf16 %v871, %v869
        %v958 = vpack.c.bf16 %v872, %v870
        %v959 = vpack.c.bf16 %v875, %v873
        %v960 = vpack.c.bf16 %v876, %v874
        %v961 = vpack.c.bf16 %v879, %v877
        %v962 = vpack.c.bf16 %v880, %v878
        %v963 = vpack.c.bf16 %v883, %v881
        %v964 = vpack.c.bf16 %v884, %v882
        %v965 = vpack.c.bf16 %v887, %v885
        %v966 = vpack.c.bf16 %v888, %v886
        %v967 = vpack.c.bf16 %v891, %v889
        %v968 = vpack.c.bf16 %v892, %v890
        %v969 = vpack.c.bf16 %v895, %v893
        %v970 = vpack.c.bf16 %v896, %v894
        %v971 = vpack.c.bf16 %v899, %v897
        %v972 = vpack.c.bf16 %v900, %v898
        %v973 = vpack.c.bf16 %v903, %v901
        %v974 = vpack.c.bf16 %v904, %v902
        %v975 = vpack.c.bf16 %v907, %v905
        %v976 = vpack.c.bf16 %v908, %v906
        %v977 = vpack.c.bf16 %v911, %v909
        %v978 = vpack.c.bf16 %v912, %v910
        %v979 = vpack.c.bf16 %v915, %v913
        %v980 = vpack.c.bf16 %v916, %v914
        %v981 = vld [vmem:[%s336] sm:$0xf]
        %v982 = vld [vmem:[%s336 + $0x4] sm:$0xf]
        %v983 = vld [vmem:[%s336 + $0x8] sm:$0xf]
        %v984 = vld [vmem:[%s336 + $0xc] sm:$0xf]
        %v985 = vld [vmem:[%s336 + $0x10] sm:$0xf]
        %v986 = vld [vmem:[%s336 + $0x14] sm:$0xf]
        %v987 = vld [vmem:[%s336 + $0x18] sm:$0xf]
        %v988 = vld [vmem:[%s336 + $0x1c] sm:$0xf]
        %v989 = vld [vmem:[%s336 + $0x20] sm:$0xf]
        %v990 = vld [vmem:[%s336 + $0x24] sm:$0xf]
        %v991 = vld [vmem:[%s336 + $0x28] sm:$0xf]
        %v992 = vld [vmem:[%s336 + $0x2c] sm:$0xf]
        %v993 = vld [vmem:[%s336 + $0x30] sm:$0xf]
        %v994 = vld [vmem:[%s336 + $0x34] sm:$0xf]
        %v995 = vld [vmem:[%s336 + $0x38] sm:$0xf]
        %v996 = vld [vmem:[%s336 + $0x3c] sm:$0xf]
        %v997 = vld [vmem:[%s336 + $0x40] sm:$0xf]
        %v998 = vld [vmem:[%s336 + $0x44] sm:$0xf]
        %v999 = vld [vmem:[%s336 + $0x48] sm:$0xf]
        %v1000 = vld [vmem:[%s336 + $0x4c] sm:$0xf]
        %v1001 = vld [vmem:[%s336 + $0x50] sm:$0xf]
        %v1002 = vld [vmem:[%s336 + $0x54] sm:$0xf]
        %v1003 = vld [vmem:[%s336 + $0x58] sm:$0xf]
        %v1004 = vld [vmem:[%s336 + $0x5c] sm:$0xf]
        %v1005 = vld [vmem:[%s336 + $0x60] sm:$0xf]
        %v1006 = vld [vmem:[%s336 + $0x64] sm:$0xf]
        %v1007 = vld [vmem:[%s336 + $0x68] sm:$0xf]
        %v1008 = vld [vmem:[%s336 + $0x6c] sm:$0xf]
        %v1009 = vld [vmem:[%s336 + $0x70] sm:$0xf]
        %v1010 = vld [vmem:[%s336 + $0x74] sm:$0xf]
        %v1011 = vld [vmem:[%s336 + $0x78] sm:$0xf]
        %v1012 = vld [vmem:[%s336 + $0x7c] sm:$0xf]
        %v1045 = vunpack.c.l.b16 %v981
        %v1046 = vunpack.c.l.b16 %v982
        %v1047 = vunpack.c.l.b16 %v983
        %v1048 = vunpack.c.l.b16 %v984
        %v1049 = vunpack.c.l.b16 %v985
        %v1050 = vunpack.c.l.b16 %v986
        %v1051 = vunpack.c.l.b16 %v987
        %v1052 = vunpack.c.l.b16 %v988
        %v1053 = vunpack.c.l.b16 %v989
        %v1054 = vunpack.c.l.b16 %v990
        %v1055 = vunpack.c.l.b16 %v991
        %v1056 = vunpack.c.l.b16 %v992
        %v1057 = vunpack.c.l.b16 %v993
        %v1058 = vunpack.c.l.b16 %v994
        %v1059 = vunpack.c.l.b16 %v995
        %v1060 = vunpack.c.l.b16 %v996
        %v1061 = vunpack.c.l.b16 %v997
        %v1062 = vunpack.c.l.b16 %v998
        %v1063 = vunpack.c.l.b16 %v999
        %v1064 = vunpack.c.l.b16 %v1000
        %v1065 = vunpack.c.l.b16 %v1001
        %v1066 = vunpack.c.l.b16 %v1002
        %v1067 = vunpack.c.l.b16 %v1003
        %v1068 = vunpack.c.l.b16 %v1004
        %v1069 = vunpack.c.l.b16 %v1005
        %v1070 = vunpack.c.l.b16 %v1006
        %v1071 = vunpack.c.l.b16 %v1007
        %v1072 = vunpack.c.l.b16 %v1008
        %v1073 = vunpack.c.l.b16 %v1009
        %v1074 = vunpack.c.l.b16 %v1010
        %v1075 = vunpack.c.l.b16 %v1011
        %v1076 = vunpack.c.l.b16 %v1012
        %v1077 = vpack.c.b16 %v1046, %v1045
        %v1078 = vpack.c.b16 %v1048, %v1047
        %v1079 = vpack.c.b16 %v1050, %v1049
        %v1080 = vpack.c.b16 %v1052, %v1051
        %v1081 = vpack.c.b16 %v1054, %v1053
        %v1082 = vpack.c.b16 %v1056, %v1055
        %v1083 = vpack.c.b16 %v1058, %v1057
        %v1084 = vpack.c.b16 %v1060, %v1059
        %v1085 = vpack.c.b16 %v1062, %v1061
        %v1086 = vpack.c.b16 %v1064, %v1063
        %v1087 = vpack.c.b16 %v1066, %v1065
        %v1088 = vpack.c.b16 %v1068, %v1067
        %v1089 = vpack.c.b16 %v1070, %v1069
        %v1090 = vpack.c.b16 %v1072, %v1071
        %v1091 = vpack.c.b16 %v1074, %v1073
        %v1092 = vpack.c.b16 %v1076, %v1075
        %1109 = vmatprep.subr.bf16.mxu0 0
        %1110 = vmatpush1.bf16.msra.mxu0 %v1077
        %1111 = vmatprep.subr.bf16.mxu0 0
        %1112 = vmatpush1.bf16.msra.mxu0 %v1078
        %1113 = vmatprep.subr.bf16.mxu0 0
        %1114 = vmatpush1.bf16.msra.mxu0 %v1079
        %1115 = vmatprep.subr.bf16.mxu0 0
        %1116 = vmatpush1.bf16.msra.mxu0 %v1080
        %1117 = vmatprep.subr.bf16.mxu0 0
        %1118 = vmatpush1.bf16.msra.mxu0 %v1081
        %1119 = vmatprep.subr.bf16.mxu0 0
        %1120 = vmatpush1.bf16.msra.mxu0 %v1082
        %1121 = vmatprep.subr.bf16.mxu0 0
        %1122 = vmatpush1.bf16.msra.mxu0 %v1083
        %1123 = vmatprep.subr.bf16.mxu0 0
        %1124 = vmatpush1.bf16.msra.mxu0 %v1084
        %1125 = vmatprep.subr.bf16.mxu0 0
        %1126 = vmatpush1.bf16.msra.mxu0 %v1085
        %1127 = vmatprep.subr.bf16.mxu0 0
        %1128 = vmatpush1.bf16.msra.mxu0 %v1086
        %1129 = vmatprep.subr.bf16.mxu0 0
        %1130 = vmatpush1.bf16.msra.mxu0 %v1087
        %1131 = vmatprep.subr.bf16.mxu0 0
        %1132 = vmatpush1.bf16.msra.mxu0 %v1088
        %1133 = vmatprep.subr.bf16.mxu0 0
        %1134 = vmatpush1.bf16.msra.mxu0 %v1089
        %1135 = vmatprep.subr.bf16.mxu0 0
        %1136 = vmatpush1.bf16.msra.mxu0 %v1090
        %1137 = vmatprep.subr.bf16.mxu0 0
        %1138 = vmatpush1.bf16.msra.mxu0 %v1091
        %1139 = vmatprep.subr.bf16.mxu0 0
        %1140 = vmatpush1.bf16.msra.mxu0 %v1092
        %1141 = vmatprep.mubr.bf16.mxu0 %v950
        %1142 = vmatmul.mubr.bf16.gmra.mrb[0].mxu0 %v949
        %v1143 = vpop.f32.mrb[0].mxu0
        %v1144 = vadd.f32 0.0, %v1143
        %v1145 = vpop.f32.mrb[0].mxu0
        %v1146 = vpop.f32.mrb[0].mxu0
        %v1147 = vadd.f32 0.0, %v1146
        %v1148 = vpop.f32.mrb[0].mxu0
        %1149 = vmatprep.mubr.bf16.mxu0 %v952
        %1150 = vmatmul.mubr.bf16.gmra.mrb[0].mxu0 %v951
        %v1151 = vpop.f32.mrb[0].mxu0
        %v1152 = vadd.f32 0.0, %v1151
        %v1153 = vpop.f32.mrb[0].mxu0
        %v1154 = vpop.f32.mrb[0].mxu0
        %v1155 = vadd.f32 0.0, %v1154
        %v1156 = vpop.f32.mrb[0].mxu0
        %1157 = vmatprep.mubr.bf16.mxu0 %v954
        %1158 = vmatmul.mubr.bf16.gmra.mrb[0].mxu0 %v953
        %v1159 = vpop.f32.mrb[0].mxu0
        %v1160 = vadd.f32 0.0, %v1159
        %v1161 = vpop.f32.mrb[0].mxu0
        %v1162 = vpop.f32.mrb[0].mxu0
        %v1163 = vadd.f32 0.0, %v1162
        %v1164 = vpop.f32.mrb[0].mxu0
        %1165 = vmatprep.mubr.bf16.mxu0 %v956
        %1166 = vmatmul.mubr.bf16.gmra.mrb[0].mxu0 %v955
        %v1167 = vpop.f32.mrb[0].mxu0
        %v1168 = vadd.f32 0.0, %v1167
        %v1169 = vpop.f32.mrb[0].mxu0
        %v1170 = vpop.f32.mrb[0].mxu0
        %v1171 = vadd.f32 0.0, %v1170
        %v1172 = vpop.f32.mrb[0].mxu0
        %1173 = vmatprep.mubr.bf16.mxu0 %v958
        %1174 = vmatmul.mubr.bf16.gmra.mrb[0].mxu0 %v957
        %v1175 = vpop.f32.mrb[0].mxu0
        %v1176 = vadd.f32 0.0, %v1175
        %v1177 = vpop.f32.mrb[0].mxu0
        %v1178 = vpop.f32.mrb[0].mxu0
        %v1179 = vadd.f32 0.0, %v1178
        %v1180 = vpop.f32.mrb[0].mxu0
        %1181 = vmatprep.mubr.bf16.mxu0 %v960
        %1182 = vmatmul.mubr.bf16.gmra.mrb[0].mxu0 %v959
        %v1183 = vpop.f32.mrb[0].mxu0
        %v1184 = vadd.f32 0.0, %v1183
        %v1185 = vpop.f32.mrb[0].mxu0
        %v1186 = vpop.f32.mrb[0].mxu0
        %v1187 = vadd.f32 0.0, %v1186
        %v1188 = vpop.f32.mrb[0].mxu0
        %1189 = vmatprep.mubr.bf16.mxu0 %v962
        %1190 = vmatmul.mubr.bf16.gmra.mrb[0].mxu0 %v961
        %v1191 = vpop.f32.mrb[0].mxu0
        %v1192 = vadd.f32 0.0, %v1191
        %v1193 = vpop.f32.mrb[0].mxu0
        %v1194 = vpop.f32.mrb[0].mxu0
        %v1195 = vadd.f32 0.0, %v1194
        %v1196 = vpop.f32.mrb[0].mxu0
        %1197 = vmatprep.mubr.bf16.mxu0 %v964
        %1198 = vmatmul.mubr.bf16.gmra.mrb[0].mxu0 %v963
        %v1199 = vpop.f32.mrb[0].mxu0
        %v1200 = vadd.f32 0.0, %v1199
        %v1201 = vpop.f32.mrb[0].mxu0
        %v1202 = vpop.f32.mrb[0].mxu0
        %v1203 = vadd.f32 0.0, %v1202
        %v1204 = vpop.f32.mrb[0].mxu0
        %1205 = vmatprep.mubr.bf16.mxu0 %v966
        %1206 = vmatmul.mubr.bf16.gmra.mrb[0].mxu0 %v965
        %v1207 = vpop.f32.mrb[0].mxu0
        %v1208 = vadd.f32 0.0, %v1207
        %v1209 = vpop.f32.mrb[0].mxu0
        %v1210 = vpop.f32.mrb[0].mxu0
        %v1211 = vadd.f32 0.0, %v1210
        %v1212 = vpop.f32.mrb[0].mxu0
        %1213 = vmatprep.mubr.bf16.mxu0 %v968
        %1214 = vmatmul.mubr.bf16.gmra.mrb[0].mxu0 %v967
        %v1215 = vpop.f32.mrb[0].mxu0
        %v1216 = vadd.f32 0.0, %v1215
        %v1217 = vpop.f32.mrb[0].mxu0
        %v1218 = vpop.f32.mrb[0].mxu0
        %v1219 = vadd.f32 0.0, %v1218
        %v1220 = vpop.f32.mrb[0].mxu0
        %1221 = vmatprep.mubr.bf16.mxu0 %v970
        %1222 = vmatmul.mubr.bf16.gmra.mrb[0].mxu0 %v969
        %v1223 = vpop.f32.mrb[0].mxu0
        %v1224 = vadd.f32 0.0, %v1223
        %v1225 = vpop.f32.mrb[0].mxu0
        %v1226 = vpop.f32.mrb[0].mxu0
        %v1227 = vadd.f32 0.0, %v1226
        %v1228 = vpop.f32.mrb[0].mxu0
        %1229 = vmatprep.mubr.bf16.mxu0 %v972
        %1230 = vmatmul.mubr.bf16.gmra.mrb[0].mxu0 %v971
        %v1231 = vpop.f32.mrb[0].mxu0
        %v1232 = vadd.f32 0.0, %v1231
        %v1233 = vpop.f32.mrb[0].mxu0
        %v1234 = vpop.f32.mrb[0].mxu0
        %v1235 = vadd.f32 0.0, %v1234
        %v1236 = vpop.f32.mrb[0].mxu0
        %1237 = vmatprep.mubr.bf16.mxu0 %v974
        %1238 = vmatmul.mubr.bf16.gmra.mrb[0].mxu0 %v973
        %v1239 = vpop.f32.mrb[0].mxu0
        %v1240 = vadd.f32 0.0, %v1239
        %v1241 = vpop.f32.mrb[0].mxu0
        %v1242 = vpop.f32.mrb[0].mxu0
        %v1243 = vadd.f32 0.0, %v1242
        %v1244 = vpop.f32.mrb[0].mxu0
        %1245 = vmatprep.mubr.bf16.mxu0 %v976
        %1246 = vmatmul.mubr.bf16.gmra.mrb[0].mxu0 %v975
        %v1247 = vpop.f32.mrb[0].mxu0
        %v1248 = vadd.f32 0.0, %v1247
        %v1249 = vpop.f32.mrb[0].mxu0
        %v1250 = vpop.f32.mrb[0].mxu0
        %v1251 = vadd.f32 0.0, %v1250
        %v1252 = vpop.f32.mrb[0].mxu0
        %1253 = vmatprep.mubr.bf16.mxu0 %v978
        %1254 = vmatmul.mubr.bf16.gmra.mrb[0].mxu0 %v977
        %v1255 = vpop.f32.mrb[0].mxu0
        %v1256 = vadd.f32 0.0, %v1255
        %v1257 = vpop.f32.mrb[0].mxu0
        %v1258 = vpop.f32.mrb[0].mxu0
        %v1259 = vadd.f32 0.0, %v1258
        %v1260 = vpop.f32.mrb[0].mxu0
        %1261 = vmatprep.mubr.bf16.mxu0 %v980
        %1262 = vmatmul.mubr.bf16.gmra.mrb[0].mxu0 %v979
        %v1263 = vpop.f32.mrb[0].mxu0
        %v1264 = vadd.f32 0.0, %v1263
        %v1265 = vpop.f32.mrb[0].mxu0
        %v1266 = vpop.f32.mrb[0].mxu0
        %v1267 = vadd.f32 0.0, %v1266
        %v1268 = vpop.f32.mrb[0].mxu0
        %1269 = vdwg.mxu0
        %v1270 = vadd.f32 %v917, %v1144
        %v1271 = vadd.f32 %v918, %v1147
        %v1272 = vadd.f32 %v919, %v1152
        %v1273 = vadd.f32 %v920, %v1155
        %v1274 = vadd.f32 %v921, %v1160
        %v1275 = vadd.f32 %v922, %v1163
        %v1276 = vadd.f32 %v923, %v1168
        %v1277 = vadd.f32 %v924, %v1171
        %v1278 = vadd.f32 %v925, %v1176
        %v1279 = vadd.f32 %v926, %v1179
        %v1280 = vadd.f32 %v927, %v1184
        %v1281 = vadd.f32 %v928, %v1187
        %v1282 = vadd.f32 %v929, %v1192
        %v1283 = vadd.f32 %v930, %v1195
        %v1284 = vadd.f32 %v931, %v1200
        %v1285 = vadd.f32 %v932, %v1203
        %v1286 = vadd.f32 %v933, %v1208
        %v1287 = vadd.f32 %v934, %v1211
        %v1288 = vadd.f32 %v935, %v1216
        %v1289 = vadd.f32 %v936, %v1219
        %v1290 = vadd.f32 %v937, %v1224
        %v1291 = vadd.f32 %v938, %v1227
        %v1292 = vadd.f32 %v939, %v1232
        %v1293 = vadd.f32 %v940, %v1235
        %v1294 = vadd.f32 %v941, %v1240
        %v1295 = vadd.f32 %v942, %v1243
        %v1296 = vadd.f32 %v943, %v1248
        %v1297 = vadd.f32 %v944, %v1251
        %v1298 = vadd.f32 %v945, %v1256
        %v1299 = vadd.f32 %v946, %v1259
        %v1300 = vadd.f32 %v947, %v1264
        %v1301 = vadd.f32 %v948, %v1267
        %1302 = vst [vmem:[#allocation2] sm:$0xff] %v1270
        %1303 = vst [vmem:[#allocation2 + $0x8] sm:$0xff] %v1271
        %1304 = vst [vmem:[#allocation2 + $0x10] sm:$0xff] %v1272
        %1305 = vst [vmem:[#allocation2 + $0x18] sm:$0xff] %v1273
        %1306 = vst [vmem:[#allocation2 + $0x20] sm:$0xff] %v1274
        %1307 = vst [vmem:[#allocation2 + $0x28] sm:$0xff] %v1275
        %1308 = vst [vmem:[#allocation2 + $0x30] sm:$0xff] %v1276
        %1309 = vst [vmem:[#allocation2 + $0x38] sm:$0xff] %v1277
        %1310 = vst [vmem:[#allocation2 + $0x40] sm:$0xff] %v1278
        %1311 = vst [vmem:[#allocation2 + $0x48] sm:$0xff] %v1279
        %1312 = vst [vmem:[#allocation2 + $0x50] sm:$0xff] %v1280
        %1313 = vst [vmem:[#allocation2 + $0x58] sm:$0xff] %v1281
        %1314 = vst [vmem:[#allocation2 + $0x60] sm:$0xff] %v1282
        %1315 = vst [vmem:[#allocation2 + $0x68] sm:$0xff] %v1283
        %1316 = vst [vmem:[#allocation2 + $0x70] sm:$0xff] %v1284
        %1317 = vst [vmem:[#allocation2 + $0x78] sm:$0xff] %v1285
        %1318 = vst [vmem:[#allocation2 + $0x80] sm:$0xff] %v1286
        %1319 = vst [vmem:[#allocation2 + $0x88] sm:$0xff] %v1287
        %1320 = vst [vmem:[#allocation2 + $0x90] sm:$0xff] %v1288
        %1321 = vst [vmem:[#allocation2 + $0x98] sm:$0xff] %v1289
        %1322 = vst [vmem:[#allocation2 + $0xa0] sm:$0xff] %v1290
        %1323 = vst [vmem:[#allocation2 + $0xa8] sm:$0xff] %v1291
        %1324 = vst [vmem:[#allocation2 + $0xb0] sm:$0xff] %v1292
        %1325 = vst [vmem:[#allocation2 + $0xb8] sm:$0xff] %v1293
        %1326 = vst [vmem:[#allocation2 + $0xc0] sm:$0xff] %v1294
        %1327 = vst [vmem:[#allocation2 + $0xc8] sm:$0xff] %v1295
        %1328 = vst [vmem:[#allocation2 + $0xd0] sm:$0xff] %v1296
        %1329 = vst [vmem:[#allocation2 + $0xd8] sm:$0xff] %v1297
        %1330 = vst [vmem:[#allocation2 + $0xe0] sm:$0xff] %v1298
        %1331 = vst [vmem:[#allocation2 + $0xe8] sm:$0xff] %v1299
        %1332 = vst [vmem:[#allocation2 + $0xf0] sm:$0xff] %v1300
        %1333 = vst [vmem:[#allocation2 + $0xf8] sm:$0xff] %v1301
        %p1334 = scmp.eq.s32.totalorder %s33, 1
        // Predicated region
        $region65: #{feed_forward.1} parent=39 // pred_check
          %p1335 = pneg %p1334
        $region66: #{feed_forward.1} parent=39 // pred_check_branch
          %1337 = sbr.rel (%p1335) target = $region68
        $region67: #{feed_forward.1} parent=39 // pred_region
          %v1338 = vld [vmem:[#allocation2] sm:$0xff]
          %v1339 = vld [vmem:[#allocation2 + $0x8] sm:$0xff]
          %v1340 = vld [vmem:[#allocation2 + $0x10] sm:$0xff]
          %v1341 = vld [vmem:[#allocation2 + $0x18] sm:$0xff]
          %v1342 = vld [vmem:[#allocation2 + $0x20] sm:$0xff]
          %v1343 = vld [vmem:[#allocation2 + $0x28] sm:$0xff]
          %v1344 = vld [vmem:[#allocation2 + $0x30] sm:$0xff]
          %v1345 = vld [vmem:[#allocation2 + $0x38] sm:$0xff]
          %v1346 = vld [vmem:[#allocation2 + $0x40] sm:$0xff]
          %v1347 = vld [vmem:[#allocation2 + $0x48] sm:$0xff]
          %v1348 = vld [vmem:[#allocation2 + $0x50] sm:$0xff]
          %v1349 = vld [vmem:[#allocation2 + $0x58] sm:$0xff]
          %v1350 = vld [vmem:[#allocation2 + $0x60] sm:$0xff]
          %v1351 = vld [vmem:[#allocation2 + $0x68] sm:$0xff]
          %v1352 = vld [vmem:[#allocation2 + $0x70] sm:$0xff]
          %v1353 = vld [vmem:[#allocation2 + $0x78] sm:$0xff]
          %v1354 = vld [vmem:[#allocation2 + $0x80] sm:$0xff]
          %v1355 = vld [vmem:[#allocation2 + $0x88] sm:$0xff]
          %v1356 = vld [vmem:[#allocation2 + $0x90] sm:$0xff]
          %v1357 = vld [vmem:[#allocation2 + $0x98] sm:$0xff]
          %v1358 = vld [vmem:[#allocation2 + $0xa0] sm:$0xff]
          %v1359 = vld [vmem:[#allocation2 + $0xa8] sm:$0xff]
          %v1360 = vld [vmem:[#allocation2 + $0xb0] sm:$0xff]
          %v1361 = vld [vmem:[#allocation2 + $0xb8] sm:$0xff]
          %v1362 = vld [vmem:[#allocation2 + $0xc0] sm:$0xff]
          %v1363 = vld [vmem:[#allocation2 + $0xc8] sm:$0xff]
          %v1364 = vld [vmem:[#allocation2 + $0xd0] sm:$0xff]
          %v1365 = vld [vmem:[#allocation2 + $0xd8] sm:$0xff]
          %v1366 = vld [vmem:[#allocation2 + $0xe0] sm:$0xff]
          %v1367 = vld [vmem:[#allocation2 + $0xe8] sm:$0xff]
          %v1368 = vld [vmem:[#allocation2 + $0xf0] sm:$0xff]
          %v1369 = vld [vmem:[#allocation2 + $0xf8] sm:$0xff]
          %v1370 = vld [vmem:[#allocation11] sm:$0x1]
          %v1372 = vlaneseq
          %v1373 = vshrl.u32 %v1372, 7
          %v1374 = vsub.s32 0, %v1373
          %v1375 = vrot.slane %v1370, %v1374
          %v1377 = vadd.f32 %v1338, %v1375
          %v1378 = vadd.f32 %v1339, %v1375
          %v1379 = vadd.f32 %v1340, %v1375
          %v1380 = vadd.f32 %v1341, %v1375
          %v1381 = vadd.f32 %v1342, %v1375
          %v1382 = vadd.f32 %v1343, %v1375
          %v1383 = vadd.f32 %v1344, %v1375
          %v1384 = vadd.f32 %v1345, %v1375
          %v1385 = vadd.f32 %v1346, %v1375
          %v1386 = vadd.f32 %v1347, %v1375
          %v1387 = vadd.f32 %v1348, %v1375
          %v1388 = vadd.f32 %v1349, %v1375
          %v1389 = vadd.f32 %v1350, %v1375
          %v1390 = vadd.f32 %v1351, %v1375
          %v1391 = vadd.f32 %v1352, %v1375
          %v1392 = vadd.f32 %v1353, %v1375
          %v1393 = vadd.f32 %v1354, %v1375
          %v1394 = vadd.f32 %v1355, %v1375
          %v1395 = vadd.f32 %v1356, %v1375
          %v1396 = vadd.f32 %v1357, %v1375
          %v1397 = vadd.f32 %v1358, %v1375
          %v1398 = vadd.f32 %v1359, %v1375
          %v1399 = vadd.f32 %v1360, %v1375
          %v1400 = vadd.f32 %v1361, %v1375
          %v1401 = vadd.f32 %v1362, %v1375
          %v1402 = vadd.f32 %v1363, %v1375
          %v1403 = vadd.f32 %v1364, %v1375
          %v1404 = vadd.f32 %v1365, %v1375
          %v1405 = vadd.f32 %v1366, %v1375
          %v1406 = vadd.f32 %v1367, %v1375
          %v1407 = vadd.f32 %v1368, %v1375
          %v1408 = vadd.f32 %v1369, %v1375
          %1409 = vst [vmem:[%s381] sm:$0xff] %v1377
          %1410 = vst [vmem:[%s381 + $0x8] sm:$0xff] %v1378
          %1411 = vst [vmem:[%s381 + $0x10] sm:$0xff] %v1379
          %1412 = vst [vmem:[%s381 + $0x18] sm:$0xff] %v1380
          %1413 = vst [vmem:[%s381 + $0x20] sm:$0xff] %v1381
          %1414 = vst [vmem:[%s381 + $0x28] sm:$0xff] %v1382
          %1415 = vst [vmem:[%s381 + $0x30] sm:$0xff] %v1383
          %1416 = vst [vmem:[%s381 + $0x38] sm:$0xff] %v1384
          %1417 = vst [vmem:[%s381 + $0x40] sm:$0xff] %v1385
          %1418 = vst [vmem:[%s381 + $0x48] sm:$0xff] %v1386
          %1419 = vst [vmem:[%s381 + $0x50] sm:$0xff] %v1387
          %1420 = vst [vmem:[%s381 + $0x58] sm:$0xff] %v1388
          %1421 = vst [vmem:[%s381 + $0x60] sm:$0xff] %v1389
          %1422 = vst [vmem:[%s381 + $0x68] sm:$0xff] %v1390
          %1423 = vst [vmem:[%s381 + $0x70] sm:$0xff] %v1391
          %1424 = vst [vmem:[%s381 + $0x78] sm:$0xff] %v1392
          %1425 = vst [vmem:[%s381 + $0x80] sm:$0xff] %v1393
          %1426 = vst [vmem:[%s381 + $0x88] sm:$0xff] %v1394
          %1427 = vst [vmem:[%s381 + $0x90] sm:$0xff] %v1395
          %1428 = vst [vmem:[%s381 + $0x98] sm:$0xff] %v1396
          %1429 = vst [vmem:[%s381 + $0xa0] sm:$0xff] %v1397
          %1430 = vst [vmem:[%s381 + $0xa8] sm:$0xff] %v1398
          %1431 = vst [vmem:[%s381 + $0xb0] sm:$0xff] %v1399
          %1432 = vst [vmem:[%s381 + $0xb8] sm:$0xff] %v1400
          %1433 = vst [vmem:[%s381 + $0xc0] sm:$0xff] %v1401
          %1434 = vst [vmem:[%s381 + $0xc8] sm:$0xff] %v1402
          %1435 = vst [vmem:[%s381 + $0xd0] sm:$0xff] %v1403
          %1436 = vst [vmem:[%s381 + $0xd8] sm:$0xff] %v1404
          %1437 = vst [vmem:[%s381 + $0xe0] sm:$0xff] %v1405
          %1438 = vst [vmem:[%s381 + $0xe8] sm:$0xff] %v1406
          %1439 = vst [vmem:[%s381 + $0xf0] sm:$0xff] %v1407
          %1440 = vst [vmem:[%s381 + $0xf8] sm:$0xff] %v1408
        $region68: #{feed_forward.1} parent=39 // pred_fallthru
          _
        %s1441 = sand.u32 %s173, 1
        %s1442 = scalar_lea.sflag [#allocation5], %s1441
        %s1443 = sand.u32 %s173, 1
        %s1444 = smul.addr %s1443, 256
        %s1445 = scalar_lea.vmem [#allocation12], %s1444
        // Predicated region
        $region69: #{feed_forward.1} parent=39 // pred_check
          %p1446 = pneg %p183
        $region70: #{feed_forward.1} parent=39 // pred_check_branch
          %1448 = sbr.rel (%p1446) target = $region72
        $region71: #{feed_forward.1} parent=39 // pred_region
          %s1449 = smul.u32 32, %s32
          %s1451 = ssub.s32 4096, 4096
          %1452 = vsyncadd %s1442, %s1451
          %s1453 = smul.addr %s1449, 128
          %s1454 = scalar_lea.hbm %s5, %s1453
          %s1455 = sshll.u32 %s1445, 4
          %s1456 = int_to_ptr.vmem [resolvable:$true] %s1455
          %1461 = dma.vmem_to_hbm [thread:$0]  %s1456, 4096, %s1454, %s1442, 128, 128, 8
        $region72: #{feed_forward.1} parent=39 // pred_fallthru
          _
      $region40: #{feed_forward.1} parent=5 // pred_fallthru
        _
      %p1462 = scmp.le.s32.totalorder 2, %s23
      // Predicated region
      $region73: #{feed_forward.1} parent=5 // pred_check
        %p1463 = pneg %p1462
      $region74: #{feed_forward.1} parent=5 // pred_check_branch
        %1465 = sbr.rel (%p1463) target = $region76
      $region75: #{feed_forward.1} parent=5 // pred_region
        %s1466 = ssub.s32 %s23, 2
        // Predicated region
        $region77: #{feed_forward.1} parent=75 // pred_check
          %p1467 = pneg %p189
        $region78: #{feed_forward.1} parent=75 // pred_check_branch
          %1469 = sbr.rel (%p1467) target = $region80
        $region79: #{feed_forward.1} parent=75 // pred_region
          %s1470 = sand.u32 %s174, 1
          %s1471 = scalar_lea.sflag [#allocation5], %s1470
          %s1472 = sand.u32 %s174, 1
          %s1473 = smul.addr %s1472, 256
          %s1474 = scalar_lea.vmem [#allocation12], %s1473
          %1475 = dma.done %s1471, 4096
        $region80: #{feed_forward.1} parent=75 // pred_fallthru
          _
      $region76: #{feed_forward.1} parent=5 // pred_fallthru
        _
    $region6: #{feed_forward.1} parent=1 // loop_footer
      %s27 = sadd.s32 1, %s23
    $region7: #{feed_forward.1} parent=1 // loop_footer_branch
      %22 = sbr.rel target = $region3
    $region8: #{feed_forward.1} parent=1 // loop_exit
      _
    %1476 = vsyncpa [#allocation4], 1
    %s1477 = scalar_lea.sflag [#allocation4], 1
    %1478 = vsyncpa %s1477, 1
    %1479 = vsyncpa [#allocation7], 1
    %s1480 = scalar_lea.sflag [#allocation7], 1
    %1481 = vsyncpa %s1480, 1
    %1482 = vsyncpa [#allocation10], 1
    %s1483 = scalar_lea.sflag [#allocation10], 1
    %1484 = vsyncpa %s1483, 1
    %1485 = vsyncpa [#allocation5], 1
    %s1486 = scalar_lea.sflag [#allocation5], 1
    %1487 = vsyncpa %s1486, 1

</llo_original>
